<compile_context>
chip_gen: v7x
topology: tpu7x:2x2x1
jax: 0.10.0
libtpu: 0.0.40
codegen_flags: <defaults>
</compile_context>

<pallas_src>
import numpy as np

import jax
import jax.numpy as jnp
from jax.experimental import pallas as pl
from jax.experimental.pallas import tpu as pltpu

EPS = 1e-5
LANE_W = 128      # lane-dense width every stage activation / weight is padded to
N_STAGE_MM = 6    # matmuls per stage: enc, downsample, res1, res2, se1, se2
N_STAGES = 3


# ---------------------------------------------------------------------------
# Fused kernel: entire Encoder forward in one launch.
# ---------------------------------------------------------------------------
def _fused_encoder_kernel(x_ref, w_ref, b_ref, cw_ref, cb_ref, out_ref):
    h = x_ref[...]                                         # (bt, 128) f32, pad lanes = 0

    def affine(v, idx):
        w = w_ref[idx, :, :]                               # (128, 128) bf16 (static slice)
        b = b_ref[idx:idx + 1, :]                          # (1, 128)   f32  (static slice)
        return jnp.dot(v.astype(jnp.bfloat16), w,
                       preferred_element_type=jnp.float32) + b

    idx = 0
    for _ in range(N_STAGES):
        # --- EncoderBlock: masked linear (+ BN folded) + Swish ---
        y = affine(h, idx); idx += 1
        y = y * jax.nn.sigmoid(y)
        # --- DownSampleBlock: per-position linear as one matmul (+ BN folded) + Swish ---
        z = affine(y, idx); idx += 1
        z = z * jax.nn.sigmoid(z)
        # --- ResidualBlock.seq: Linear(+BN) + Swish + Linear (block-diag over E) ---
        h1 = affine(z, idx); idx += 1
        h1 = h1 * jax.nn.sigmoid(h1)
        h2 = affine(h1, idx); idx += 1
        # --- SELayer: mean-over-positions / broadcast folded into the FC weights ---
        s = jnp.maximum(affine(h2, idx), 0.0); idx += 1
        g = jax.nn.sigmoid(affine(s, idx)); idx += 1
        # residual: x + 0.1 * SE(y)
        h = z + 0.1 * (h2 * g)

    # condition_x: Swish + Linear(L3*E3 -> 2*latent), lane-padded output
    hf = h * jax.nn.sigmoid(h)
    out_ref[...] = (jnp.dot(hf.astype(jnp.bfloat16), cw_ref[...],
                            preferred_element_type=jnp.float32)
                    + cb_ref[0:1, :])


# ---------------------------------------------------------------------------
# Deterministic parameter construction + all layout/BN folding (build time only)
# ---------------------------------------------------------------------------
def _bn_scale_shift(num_features):
    # PyTorch BatchNorm1d defaults: gamma=1, beta=0, running_mean=0, running_var=1.
    gamma = jnp.ones((num_features,), jnp.float32)
    beta = jnp.zeros((num_features,), jnp.float32)
    mean = jnp.zeros((num_features,), jnp.float32)
    var = jnp.ones((num_features,), jnp.float32)
    scale = gamma / jnp.sqrt(var + EPS)
    shift = beta - mean * scale
    return scale, shift


def _linear_params(key, fan_in, fan_out):
    kw, kb = jax.random.split(key)
    bound = 1.0 / np.sqrt(fan_in)
    w = jax.random.uniform(kw, (fan_in, fan_out), jnp.float32, -bound, bound)
    b = jax.random.uniform(kb, (fan_out,), jnp.float32, -bound, bound)
    return w, b


def _make_kernel_mask(c_out, c_in, kernel_size):
    ks = min(kernel_size, c_in)
    mask = np.zeros((c_out, c_in), np.float32)
    for o in range(c_out):
        start = (o * c_in) // c_out
        for k in range(ks):
            mask[o, (start + k) % c_in] = 1.0
    return jnp.asarray(mask)


def _build_stage(key, in_fmt, sparse_fmt, lin_fmt, permute_input,
                 kernel_size=4, se_reduction=4):
    Cin, Lin = in_fmt          # EncoderBlock input format
    S, E = sparse_fmt          # (sparse_embedding_i, embedding_dim_i)
    L, _ = lin_fmt             # (linear_embedding_i, embedding_dim_i)
    assert Cin * Lin <= LANE_W and S * E <= LANE_W and E * L <= LANE_W
    k_enc, k_ds, k_r1, k_r2, k_se1, k_se2 = jax.random.split(key, 6)

    # ---- EncoderBlock: block-masked dense linear, BatchNorm folded into columns ----
    w, b = _linear_params(k_enc, Cin * Lin, S * E)
    mask = _make_kernel_mask(S, Cin, kernel_size)                       # (S, Cin)
    mask_full = jnp.broadcast_to(mask.T[:, None, :, None], (Cin, Lin, S, E))
    w = (w.reshape(Cin, Lin, S, E) * mask_full).reshape(Cin * Lin, S * E)
    bn_s, bn_t = _bn_scale_shift(S * E)
    enc_w = w * bn_s[None, :]
    enc_b = b * bn_s + bn_t
    if permute_input:
        # previous stage's activation is flattened in (E_prev, L_prev) order while the
        # torch module flattens (L_prev, E_prev); permute weight rows instead of the data.
        enc_w = enc_w.reshape(Cin, Lin, S * E).transpose(1, 0, 2).reshape(Cin * Lin, S * E)

    # ---- DownSampleBlock: Linear(S->L) applied per position e, as one matmul ----
    w_ds, b_ds = _linear_params(k_ds, S, L)
    ds_w = jnp.einsum('sl,ef->sefl', w_ds,
                      jnp.eye(E, dtype=jnp.float32)).reshape(S * E, E * L)
    ds_b = jnp.tile(b_ds, E)                                            # (E*L,)
    bn_s, bn_t = _bn_scale_shift(L * E)                                 # torch order (l, e)
    scale_p = bn_s.reshape(L, E).T.reshape(-1)                          # -> (e, l) order
    shift_p = bn_t.reshape(L, E).T.reshape(-1)
    ds_w = ds_w * scale_p[None, :]
    ds_b = ds_b * scale_p + shift_p

    # ---- ResidualBlock seq: Linear(L,L)+BN(L)+Swish+Linear(L,L), block-diag over E ----
    w1, b1 = _linear_params(k_r1, L, L)
    bn_s, bn_t = _bn_scale_shift(L)
    w1 = w1 * bn_s[None, :]
    b1 = b1 * bn_s + bn_t
    w2, b2 = _linear_params(k_r2, L, L)
    eye_e = jnp.eye(E, dtype=jnp.float32)
    r_w1 = jnp.kron(eye_e, w1)
    r_b1 = jnp.tile(b1, E)
    r_w2 = jnp.kron(eye_e, w2)
    r_b2 = jnp.tile(b2, E)

    # ---- SELayer(L): squeeze(mean over E) -> fc -> relu -> fc -> sigmoid -> scale ----
    cr = max(L // se_reduction, 1)
    se_w1, se_b1 = _linear_params(k_se1, L, cr)
    se_w2, se_b2 = _linear_params(k_se2, cr, L)
    mean_m = jnp.kron(jnp.ones((E, 1), jnp.float32) / E,
                      jnp.eye(L, dtype=jnp.float32))                    # (E*L, L)
    bcast_m = jnp.kron(jnp.ones((1, E), jnp.float32),
                       jnp.eye(L, dtype=jnp.float32))                   # (L, E*L)
    se_w1_big = mean_m @ se_w1                                          # (E*L, cr)
    se_w2_big = se_w2 @ bcast_m                                         # (cr, E*L)
    se_b2_big = jnp.tile(se_b2, E)                                      # (E*L,)

    return [(enc_w, enc_b), (ds_w, ds_b), (r_w1, r_b1), (r_w2, r_b2),
            (se_w1_big, se_b1), (se_w2_big, se_b2_big)]


def _pad_weight(w):
    r, c = w.shape
    assert r <= LANE_W and c <= LANE_W
    return jnp.zeros((LANE_W, LANE_W), jnp.float32).at[:r, :c].set(w)


def _round_up(x, m):
    return ((x + m - 1) // m) * m


def build_encoder_params(key, data_config, enc_cfg, latent_dim):
    num_class = data_config["num_class"]
    num_each_class = data_config["num_each_class"]
    input_dim = enc_cfg["input_dim"]

    stage_fmts = [
        ((num_class, input_dim * num_each_class),
         (enc_cfg["sparse_embedding1"], enc_cfg["embedding_dim1"]),
         (enc_cfg["linear_embedding1"], enc_cfg["embedding_dim1"]), False),
        ((enc_cfg["linear_embedding1"], enc_cfg["embedding_dim1"]),
         (enc_cfg["sparse_embedding2"], enc_cfg["embedding_dim2"]),
         (enc_cfg["linear_embedding2"], enc_cfg["embedding_dim2"]), True),
        ((enc_cfg["linear_embedding2"], enc_cfg["embedding_dim2"]),
         (enc_cfg["sparse_embedding3"], enc_cfg["embedding_dim3"]),
         (enc_cfg["linear_embedding3"], enc_cfg["embedding_dim3"]), True),
    ]
    keys = jax.random.split(key, 4)
    pairs = []
    for i, (in_fmt, sp_fmt, lin_fmt, perm) in enumerate(stage_fmts):
        pairs += _build_stage(keys[i], in_fmt, sp_fmt, lin_fmt, perm)
    assert len(pairs) == N_STAGES * N_STAGE_MM

    # One packed bf16 weight slab (18, 128, 128) + one f32 bias slab (24, 128).
    w_slab = jnp.stack([_pad_weight(w) for w, _ in pairs]).astype(jnp.bfloat16)
    n_b_pad = _round_up(len(pairs), 8)
    b_slab = jnp.zeros((n_b_pad, LANE_W), jnp.float32)
    for i, (_, b) in enumerate(pairs):
        b_slab = b_slab.at[i, :b.shape[0]].set(b)

    # condition_x: Swish (in-kernel) + Linear(L3*E3 -> 2*latent).  Rows permuted to the
    # (E3, L3) flatten order of the kernel's last activation; output lanes padded to 128.
    L3, E3 = stage_fmts[-1][2]
    out_dim = latent_dim * 2
    out_pad = max(LANE_W, _round_up(out_dim, LANE_W))
    cond_w, cond_b = _linear_params(keys[3], L3 * E3, out_dim)
    cond_w = cond_w.reshape(L3, E3, out_dim).transpose(1, 0, 2).reshape(E3 * L3, out_dim)
    cw = jnp.zeros((LANE_W, out_pad), jnp.float32).at[:E3 * L3, :out_dim].set(cond_w)
    cb = jnp.zeros((8, out_pad), jnp.float32).at[0, :out_dim].set(cond_b)

    return dict(w_slab=w_slab, b_slab=b_slab,
                cond_w=cw.astype(jnp.bfloat16), cond_b=cb)


# ---------------------------------------------------------------------------
# Forward pass: single fused pallas_call, gridded over batch tiles.
# ---------------------------------------------------------------------------
def encoder_forward(params, x, data_config, enc_cfg, latent_dim):
    num_class = data_config["num_class"]
    num_each_class = data_config["num_each_class"]
    assert x.shape[1] == num_class * num_each_class
    B = x.shape[0]
    F0 = num_class * num_each_class * enc_cfg["input_dim"]
    assert F0 <= LANE_W

    w_slab, b_slab = params["w_slab"], params["b_slab"]
    cond_w, cond_b = params["cond_w"], params["cond_b"]
    assert w_slab.shape[0] == N_STAGES * N_STAGE_MM
    out_pad = cond_w.shape[1]
    out_dim = latent_dim * 2

    bt = min(128, _round_up(max(B, 1), 8))      # batch tile: multiple of 8, <= 128
    B_pad = _round_up(B, bt)

    x_flat = x.reshape(B, -1).astype(jnp.float32)
    x_pad = jnp.zeros((B_pad, LANE_W), jnp.float32).at[:B, :F0].set(x_flat)

    n_mm = w_slab.shape[0]
    cost = pl.CostEstimate(
        flops=2 * B_pad * LANE_W * (LANE_W * n_mm + out_pad),
        transcendentals=13 * B_pad * LANE_W,
        bytes_accessed=(x_pad.size * 4 + w_slab.size * 2 + b_slab.size * 4
                        + cond_w.size * 2 + cond_b.size * 4 + B_pad * out_pad * 4),
    )

    out = pl.pallas_call(
        _fused_encoder_kernel,
        out_shape=jax.ShapeDtypeStruct((B_pad, out_pad), jnp.float32),
        grid=(B_pad // bt,),
        in_specs=[
            pl.BlockSpec((bt, LANE_W), lambda i: (i, 0)),
            pl.BlockSpec(w_slab.shape, lambda i: (0, 0, 0)),   # constant: stays resident
            pl.BlockSpec(b_slab.shape, lambda i: (0, 0)),
            pl.BlockSpec(cond_w.shape, lambda i: (0, 0)),
            pl.BlockSpec(cond_b.shape, lambda i: (0, 0)),
        ],
        out_specs=pl.BlockSpec((bt, out_pad), lambda i: (i, 0)),
        compiler_params=pltpu.CompilerParams(dimension_semantics=("parallel",)),
        cost_estimate=cost,
    )(x_pad, w_slab, b_slab, cond_w, cond_b)

    return out[:B, :out_dim]


# ---------------------------------------------------------------------------
# Pure-JAX reference (same math / same bf16 casts) for a correctness check.
# ---------------------------------------------------------------------------
def _reference_forward(params, x, data_config, enc_cfg, latent_dim):
    B = x.shape[0]
    F0 = data_config["num_class"] * data_config["num_each_class"] * enc_cfg["input_dim"]
    h = jnp.zeros((B, LANE_W), jnp.float32).at[:, :F0].set(
        x.reshape(B, -1).astype(jnp.float32))
    w_slab, b_slab = params["w_slab"], params["b_slab"]

    def affine(v, i):
        return jnp.dot(v.astype(jnp.bfloat16), w_slab[i],
                       preferred_element_type=jnp.float32) + b_slab[i:i + 1, :]

    idx = 0
    for _ in range(N_STAGES):
        y = affine(h, idx); idx += 1
        y = y * jax.nn.sigmoid(y)
        z = affine(y, idx); idx += 1
        z = z * jax.nn.sigmoid(z)
        h1 = affine(z, idx); idx += 1
        h1 = h1 * jax.nn.sigmoid(h1)
        h2 = affine(h1, idx); idx += 1
        s = jnp.maximum(affine(h2, idx), 0.0); idx += 1
        g = jax.nn.sigmoid(affine(s, idx)); idx += 1
        h = z + 0.1 * (h2 * g)
    hf = h * jax.nn.sigmoid(h)
    out = jnp.dot(hf.astype(jnp.bfloat16), params["cond_w"],
                  preferred_element_type=jnp.float32) + params["cond_b"][0:1, :]
    return out[:, :latent_dim * 2]


# ---------------------------------------------------------------------------
if __name__ == "__main__":
    data_config = dict(num_class=4, num_each_class=2)
    encoder_config = dict(
        input_dim=4, bn_momentum=0.01,
        sparse_embedding1=16, embedding_dim1=8, linear_embedding1=8,
        sparse_embedding2=16, embedding_dim2=8, linear_embedding2=8,
        sparse_embedding3=16, embedding_dim3=8, linear_embedding3=8,
    )
    latent_dim = 32
    B = 2

    key = jax.random.PRNGKey(0)
    kx, kp = jax.random.split(key)
    # x: (B, num_class * num_each_class, input_dim) — matches the torch forward's
    # assert + reshape into (B, num_class, input_dim * num_each_class).
    x = jax.random.normal(
        kx,
        (B, data_config["num_class"] * data_config["num_each_class"],
         encoder_config["input_dim"]),
        jnp.float32,
    )
    params = build_encoder_params(kp, data_config, encoder_config, latent_dim)

    z = encoder_forward(params, x, data_config, encoder_config, latent_dim)
    z = jax.block_until_ready(z)
    assert z.shape == (B, latent_dim * 2) and z.dtype == jnp.float32
    assert bool(jnp.all(jnp.isfinite(z)))

    z_ref = jax.block_until_ready(
        _reference_forward(params, x, data_config, encoder_config, latent_dim))
    np.testing.assert_allclose(np.asarray(z), np.asarray(z_ref), rtol=2e-2, atol=2e-2)

    print("KERNEL_OK")
</pallas_src>

<mosaic_0001>
module attributes {stable_mosaic.version = 11 : i64} {
  func.func @_fused_encoder_kernel(%arg0: i32, %arg1: memref<8x128xf32, #tpu.memory_space<vmem>>, %arg2: memref<18x128x128xbf16, #tpu.memory_space<vmem>>, %arg3: memref<24x128xf32, #tpu.memory_space<vmem>>, %arg4: memref<128x128xbf16, #tpu.memory_space<vmem>>, %arg5: memref<8x128xf32, #tpu.memory_space<vmem>>, %arg6: memref<8x128xf32, #tpu.memory_space<vmem>>) attributes {dimension_semantics = [#tpu.dimension_semantics<parallel>], iteration_bounds = array<i64: 1>, scalar_prefetch = 0 : i64, scratch_operands = 0 : i64, tpu.core_type = #tpu.core_type<tc>, window_params = [{transform_indices = @transform_0, window_bounds = array<i64: 8, 128>}, {pipeline_mode = #tpu.pipeline_mode<synchronous>, transform_indices = @transform_1, window_bounds = array<i64: 18, 128, 128>}, {pipeline_mode = #tpu.pipeline_mode<synchronous>, transform_indices = @transform_2, window_bounds = array<i64: 24, 128>}, {pipeline_mode = #tpu.pipeline_mode<synchronous>, transform_indices = @transform_3, window_bounds = array<i64: 128, 128>}, {pipeline_mode = #tpu.pipeline_mode<synchronous>, transform_indices = @transform_4, window_bounds = array<i64: 8, 128>}, {transform_indices = @transform_5, window_bounds = array<i64: 8, 128>}]} {
    %c0 = arith.constant 0 : index
    %c0_0 = arith.constant 0 : index
    %0 = vector.load %arg1[%c0, %c0_0] : memref<8x128xf32, #tpu.memory_space<vmem>>, vector<8x128xf32>
    %c0_1 = arith.constant 0 : index
    %c0_2 = arith.constant 0 : index
    %c0_3 = arith.constant 0 : index
    %1 = vector.load %arg2[%c0_1, %c0_2, %c0_3] : memref<18x128x128xbf16, #tpu.memory_space<vmem>>, vector<1x128x128xbf16>
    %2 = vector.shape_cast %1 : vector<1x128x128xbf16> to vector<128x128xbf16>
    %c0_4 = arith.constant 0 : index
    %c0_5 = arith.constant 0 : index
    %3 = vector.load %arg3[%c0_4, %c0_5] : memref<24x128xf32, #tpu.memory_space<vmem>>, vector<1x128xf32>
    %4 = arith.truncf %0 : vector<8x128xf32> to vector<8x128xbf16>
    %cst = arith.constant dense<0.000000e+00> : vector<8x128xf32>
    %5 = tpu.matmul %4, %2, %cst {dimension_numbers = #tpu.dot_dimension_numbers<[1], [0], [0], [1], [0, 0, 1, 1], [], []>} : vector<8x128xbf16>, vector<128x128xbf16>, vector<8x128xf32> -> vector<8x128xf32>
    %6 = vector.broadcast %3 : vector<1x128xf32> to vector<8x128xf32>
    %7 = arith.addf %5, %6 : vector<8x128xf32>
    %8 = arith.negf %7 : vector<8x128xf32>
    %9 = math.exp %8 : vector<8x128xf32>
    %cst_6 = arith.constant 1.000000e+00 : f32
    %10 = vector.broadcast %cst_6 : f32 to vector<8x128xf32>
    %11 = arith.addf %10, %9 : vector<8x128xf32>
    %12 = arith.divf %10, %11 : vector<8x128xf32>
    %13 = arith.mulf %7, %12 : vector<8x128xf32>
    %c1 = arith.constant 1 : index
    %c0_7 = arith.constant 0 : index
    %c0_8 = arith.constant 0 : index
    %14 = vector.load %arg2[%c1, %c0_7, %c0_8] : memref<18x128x128xbf16, #tpu.memory_space<vmem>>, vector<1x128x128xbf16>
    %15 = vector.shape_cast %14 : vector<1x128x128xbf16> to vector<128x128xbf16>
    %c1_9 = arith.constant 1 : index
    %c0_10 = arith.constant 0 : index
    %16 = vector.load %arg3[%c1_9, %c0_10] : memref<24x128xf32, #tpu.memory_space<vmem>>, vector<1x128xf32>
    %17 = arith.truncf %13 : vector<8x128xf32> to vector<8x128xbf16>
    %cst_11 = arith.constant dense<0.000000e+00> : vector<8x128xf32>
    %18 = tpu.matmul %17, %15, %cst_11 {dimension_numbers = #tpu.dot_dimension_numbers<[1], [0], [0], [1], [0, 0, 1, 1], [], []>} : vector<8x128xbf16>, vector<128x128xbf16>, vector<8x128xf32> -> vector<8x128xf32>
    %19 = vector.broadcast %16 : vector<1x128xf32> to vector<8x128xf32>
    %20 = arith.addf %18, %19 : vector<8x128xf32>
    %21 = arith.negf %20 : vector<8x128xf32>
    %22 = math.exp %21 : vector<8x128xf32>
    %cst_12 = arith.constant 1.000000e+00 : f32
    %23 = vector.broadcast %cst_12 : f32 to vector<8x128xf32>
    %24 = arith.addf %23, %22 : vector<8x128xf32>
    %25 = arith.divf %23, %24 : vector<8x128xf32>
    %26 = arith.mulf %20, %25 : vector<8x128xf32>
    %c2 = arith.constant 2 : index
    %c0_13 = arith.constant 0 : index
    %c0_14 = arith.constant 0 : index
    %27 = vector.load %arg2[%c2, %c0_13, %c0_14] : memref<18x128x128xbf16, #tpu.memory_space<vmem>>, vector<1x128x128xbf16>
    %28 = vector.shape_cast %27 : vector<1x128x128xbf16> to vector<128x128xbf16>
    %c2_15 = arith.constant 2 : index
    %c0_16 = arith.constant 0 : index
    %29 = vector.load %arg3[%c2_15, %c0_16] : memref<24x128xf32, #tpu.memory_space<vmem>>, vector<1x128xf32>
    %30 = arith.truncf %26 : vector<8x128xf32> to vector<8x128xbf16>
    %cst_17 = arith.constant dense<0.000000e+00> : vector<8x128xf32>
    %31 = tpu.matmul %30, %28, %cst_17 {dimension_numbers = #tpu.dot_dimension_numbers<[1], [0], [0], [1], [0, 0, 1, 1], [], []>} : vector<8x128xbf16>, vector<128x128xbf16>, vector<8x128xf32> -> vector<8x128xf32>
    %32 = vector.broadcast %29 : vector<1x128xf32> to vector<8x128xf32>
    %33 = arith.addf %31, %32 : vector<8x128xf32>
    %34 = arith.negf %33 : vector<8x128xf32>
    %35 = math.exp %34 : vector<8x128xf32>
    %cst_18 = arith.constant 1.000000e+00 : f32
    %36 = vector.broadcast %cst_18 : f32 to vector<8x128xf32>
    %37 = arith.addf %36, %35 : vector<8x128xf32>
    %38 = arith.divf %36, %37 : vector<8x128xf32>
    %39 = arith.mulf %33, %38 : vector<8x128xf32>
    %c3 = arith.constant 3 : index
    %c0_19 = arith.constant 0 : index
    %c0_20 = arith.constant 0 : index
    %40 = vector.load %arg2[%c3, %c0_19, %c0_20] : memref<18x128x128xbf16, #tpu.memory_space<vmem>>, vector<1x128x128xbf16>
    %41 = vector.shape_cast %40 : vector<1x128x128xbf16> to vector<128x128xbf16>
    %c3_21 = arith.constant 3 : index
    %c0_22 = arith.constant 0 : index
    %42 = vector.load %arg3[%c3_21, %c0_22] : memref<24x128xf32, #tpu.memory_space<vmem>>, vector<1x128xf32>
    %43 = arith.truncf %39 : vector<8x128xf32> to vector<8x128xbf16>
    %cst_23 = arith.constant dense<0.000000e+00> : vector<8x128xf32>
    %44 = tpu.matmul %43, %41, %cst_23 {dimension_numbers = #tpu.dot_dimension_numbers<[1], [0], [0], [1], [0, 0, 1, 1], [], []>} : vector<8x128xbf16>, vector<128x128xbf16>, vector<8x128xf32> -> vector<8x128xf32>
    %45 = vector.broadcast %42 : vector<1x128xf32> to vector<8x128xf32>
    %46 = arith.addf %44, %45 : vector<8x128xf32>
    %c4 = arith.constant 4 : index
    %c0_24 = arith.constant 0 : index
    %c0_25 = arith.constant 0 : index
    %47 = vector.load %arg2[%c4, %c0_24, %c0_25] : memref<18x128x128xbf16, #tpu.memory_space<vmem>>, vector<1x128x128xbf16>
    %48 = vector.shape_cast %47 : vector<1x128x128xbf16> to vector<128x128xbf16>
    %c4_26 = arith.constant 4 : index
    %c0_27 = arith.constant 0 : index
    %49 = vector.load %arg3[%c4_26, %c0_27] : memref<24x128xf32, #tpu.memory_space<vmem>>, vector<1x128xf32>
    %50 = arith.truncf %46 : vector<8x128xf32> to vector<8x128xbf16>
    %cst_28 = arith.constant dense<0.000000e+00> : vector<8x128xf32>
    %51 = tpu.matmul %50, %48, %cst_28 {dimension_numbers = #tpu.dot_dimension_numbers<[1], [0], [0], [1], [0, 0, 1, 1], [], []>} : vector<8x128xbf16>, vector<128x128xbf16>, vector<8x128xf32> -> vector<8x128xf32>
    %52 = vector.broadcast %49 : vector<1x128xf32> to vector<8x128xf32>
    %53 = arith.addf %51, %52 : vector<8x128xf32>
    %cst_29 = arith.constant 0.000000e+00 : f32
    %54 = vector.broadcast %cst_29 : f32 to vector<8x128xf32>
    %55 = arith.maximumf %53, %54 : vector<8x128xf32>
    %c5 = arith.constant 5 : index
    %c0_30 = arith.constant 0 : index
    %c0_31 = arith.constant 0 : index
    %56 = vector.load %arg2[%c5, %c0_30, %c0_31] : memref<18x128x128xbf16, #tpu.memory_space<vmem>>, vector<1x128x128xbf16>
    %57 = vector.shape_cast %56 : vector<1x128x128xbf16> to vector<128x128xbf16>
    %c5_32 = arith.constant 5 : index
    %c0_33 = arith.constant 0 : index
    %58 = vector.load %arg3[%c5_32, %c0_33] : memref<24x128xf32, #tpu.memory_space<vmem>>, vector<1x128xf32>
    %59 = arith.truncf %55 : vector<8x128xf32> to vector<8x128xbf16>
    %cst_34 = arith.constant dense<0.000000e+00> : vector<8x128xf32>
    %60 = tpu.matmul %59, %57, %cst_34 {dimension_numbers = #tpu.dot_dimension_numbers<[1], [0], [0], [1], [0, 0, 1, 1], [], []>} : vector<8x128xbf16>, vector<128x128xbf16>, vector<8x128xf32> -> vector<8x128xf32>
    %61 = vector.broadcast %58 : vector<1x128xf32> to vector<8x128xf32>
    %62 = arith.addf %60, %61 : vector<8x128xf32>
    %63 = arith.negf %62 : vector<8x128xf32>
    %64 = math.exp %63 : vector<8x128xf32>
    %cst_35 = arith.constant 1.000000e+00 : f32
    %65 = vector.broadcast %cst_35 : f32 to vector<8x128xf32>
    %66 = arith.addf %65, %64 : vector<8x128xf32>
    %67 = arith.divf %65, %66 : vector<8x128xf32>
    %68 = arith.mulf %46, %67 : vector<8x128xf32>
    %cst_36 = arith.constant 1.000000e-01 : f32
    %69 = vector.broadcast %cst_36 : f32 to vector<8x128xf32>
    %70 = arith.mulf %69, %68 : vector<8x128xf32>
    %71 = arith.addf %26, %70 : vector<8x128xf32>
    %c6 = arith.constant 6 : index
    %c0_37 = arith.constant 0 : index
    %c0_38 = arith.constant 0 : index
    %72 = vector.load %arg2[%c6, %c0_37, %c0_38] : memref<18x128x128xbf16, #tpu.memory_space<vmem>>, vector<1x128x128xbf16>
    %73 = vector.shape_cast %72 : vector<1x128x128xbf16> to vector<128x128xbf16>
    %c6_39 = arith.constant 6 : index
    %c0_40 = arith.constant 0 : index
    %74 = vector.load %arg3[%c6_39, %c0_40] : memref<24x128xf32, #tpu.memory_space<vmem>>, vector<1x128xf32>
    %75 = arith.truncf %71 : vector<8x128xf32> to vector<8x128xbf16>
    %cst_41 = arith.constant dense<0.000000e+00> : vector<8x128xf32>
    %76 = tpu.matmul %75, %73, %cst_41 {dimension_numbers = #tpu.dot_dimension_numbers<[1], [0], [0], [1], [0, 0, 1, 1], [], []>} : vector<8x128xbf16>, vector<128x128xbf16>, vector<8x128xf32> -> vector<8x128xf32>
    %77 = vector.broadcast %74 : vector<1x128xf32> to vector<8x128xf32>
    %78 = arith.addf %76, %77 : vector<8x128xf32>
    %79 = arith.negf %78 : vector<8x128xf32>
    %80 = math.exp %79 : vector<8x128xf32>
    %cst_42 = arith.constant 1.000000e+00 : f32
    %81 = vector.broadcast %cst_42 : f32 to vector<8x128xf32>
    %82 = arith.addf %81, %80 : vector<8x128xf32>
    %83 = arith.divf %81, %82 : vector<8x128xf32>
    %84 = arith.mulf %78, %83 : vector<8x128xf32>
    %c7 = arith.constant 7 : index
    %c0_43 = arith.constant 0 : index
    %c0_44 = arith.constant 0 : index
    %85 = vector.load %arg2[%c7, %c0_43, %c0_44] : memref<18x128x128xbf16, #tpu.memory_space<vmem>>, vector<1x128x128xbf16>
    %86 = vector.shape_cast %85 : vector<1x128x128xbf16> to vector<128x128xbf16>
    %c7_45 = arith.constant 7 : index
    %c0_46 = arith.constant 0 : index
    %87 = vector.load %arg3[%c7_45, %c0_46] : memref<24x128xf32, #tpu.memory_space<vmem>>, vector<1x128xf32>
    %88 = arith.truncf %84 : vector<8x128xf32> to vector<8x128xbf16>
    %cst_47 = arith.constant dense<0.000000e+00> : vector<8x128xf32>
    %89 = tpu.matmul %88, %86, %cst_47 {dimension_numbers = #tpu.dot_dimension_numbers<[1], [0], [0], [1], [0, 0, 1, 1], [], []>} : vector<8x128xbf16>, vector<128x128xbf16>, vector<8x128xf32> -> vector<8x128xf32>
    %90 = vector.broadcast %87 : vector<1x128xf32> to vector<8x128xf32>
    %91 = arith.addf %89, %90 : vector<8x128xf32>
    %92 = arith.negf %91 : vector<8x128xf32>
    %93 = math.exp %92 : vector<8x128xf32>
    %cst_48 = arith.constant 1.000000e+00 : f32
    %94 = vector.broadcast %cst_48 : f32 to vector<8x128xf32>
    %95 = arith.addf %94, %93 : vector<8x128xf32>
    %96 = arith.divf %94, %95 : vector<8x128xf32>
    %97 = arith.mulf %91, %96 : vector<8x128xf32>
    %c8 = arith.constant 8 : index
    %c0_49 = arith.constant 0 : index
    %c0_50 = arith.constant 0 : index
    %98 = vector.load %arg2[%c8, %c0_49, %c0_50] : memref<18x128x128xbf16, #tpu.memory_space<vmem>>, vector<1x128x128xbf16>
    %99 = vector.shape_cast %98 : vector<1x128x128xbf16> to vector<128x128xbf16>
    %c8_51 = arith.constant 8 : index
    %c0_52 = arith.constant 0 : index
    %100 = vector.load %arg3[%c8_51, %c0_52] : memref<24x128xf32, #tpu.memory_space<vmem>>, vector<1x128xf32>
    %101 = arith.truncf %97 : vector<8x128xf32> to vector<8x128xbf16>
    %cst_53 = arith.constant dense<0.000000e+00> : vector<8x128xf32>
    %102 = tpu.matmul %101, %99, %cst_53 {dimension_numbers = #tpu.dot_dimension_numbers<[1], [0], [0], [1], [0, 0, 1, 1], [], []>} : vector<8x128xbf16>, vector<128x128xbf16>, vector<8x128xf32> -> vector<8x128xf32>
    %103 = vector.broadcast %100 : vector<1x128xf32> to vector<8x128xf32>
    %104 = arith.addf %102, %103 : vector<8x128xf32>
    %105 = arith.negf %104 : vector<8x128xf32>
    %106 = math.exp %105 : vector<8x128xf32>
    %cst_54 = arith.constant 1.000000e+00 : f32
    %107 = vector.broadcast %cst_54 : f32 to vector<8x128xf32>
    %108 = arith.addf %107, %106 : vector<8x128xf32>
    %109 = arith.divf %107, %108 : vector<8x128xf32>
    %110 = arith.mulf %104, %109 : vector<8x128xf32>
    %c9 = arith.constant 9 : index
    %c0_55 = arith.constant 0 : index
    %c0_56 = arith.constant 0 : index
    %111 = vector.load %arg2[%c9, %c0_55, %c0_56] : memref<18x128x128xbf16, #tpu.memory_space<vmem>>, vector<1x128x128xbf16>
    %112 = vector.shape_cast %111 : vector<1x128x128xbf16> to vector<128x128xbf16>
    %c9_57 = arith.constant 9 : index
    %c0_58 = arith.constant 0 : index
    %113 = vector.load %arg3[%c9_57, %c0_58] : memref<24x128xf32, #tpu.memory_space<vmem>>, vector<1x128xf32>
    %114 = arith.truncf %110 : vector<8x128xf32> to vector<8x128xbf16>
    %cst_59 = arith.constant dense<0.000000e+00> : vector<8x128xf32>
    %115 = tpu.matmul %114, %112, %cst_59 {dimension_numbers = #tpu.dot_dimension_numbers<[1], [0], [0], [1], [0, 0, 1, 1], [], []>} : vector<8x128xbf16>, vector<128x128xbf16>, vector<8x128xf32> -> vector<8x128xf32>
    %116 = vector.broadcast %113 : vector<1x128xf32> to vector<8x128xf32>
    %117 = arith.addf %115, %116 : vector<8x128xf32>
    %c10 = arith.constant 10 : index
    %c0_60 = arith.constant 0 : index
    %c0_61 = arith.constant 0 : index
    %118 = vector.load %arg2[%c10, %c0_60, %c0_61] : memref<18x128x128xbf16, #tpu.memory_space<vmem>>, vector<1x128x128xbf16>
    %119 = vector.shape_cast %118 : vector<1x128x128xbf16> to vector<128x128xbf16>
    %c10_62 = arith.constant 10 : index
    %c0_63 = arith.constant 0 : index
    %120 = vector.load %arg3[%c10_62, %c0_63] : memref<24x128xf32, #tpu.memory_space<vmem>>, vector<1x128xf32>
    %121 = arith.truncf %117 : vector<8x128xf32> to vector<8x128xbf16>
    %cst_64 = arith.constant dense<0.000000e+00> : vector<8x128xf32>
    %122 = tpu.matmul %121, %119, %cst_64 {dimension_numbers = #tpu.dot_dimension_numbers<[1], [0], [0], [1], [0, 0, 1, 1], [], []>} : vector<8x128xbf16>, vector<128x128xbf16>, vector<8x128xf32> -> vector<8x128xf32>
    %123 = vector.broadcast %120 : vector<1x128xf32> to vector<8x128xf32>
    %124 = arith.addf %122, %123 : vector<8x128xf32>
    %cst_65 = arith.constant 0.000000e+00 : f32
    %125 = vector.broadcast %cst_65 : f32 to vector<8x128xf32>
    %126 = arith.maximumf %124, %125 : vector<8x128xf32>
    %c11 = arith.constant 11 : index
    %c0_66 = arith.constant 0 : index
    %c0_67 = arith.constant 0 : index
    %127 = vector.load %arg2[%c11, %c0_66, %c0_67] : memref<18x128x128xbf16, #tpu.memory_space<vmem>>, vector<1x128x128xbf16>
    %128 = vector.shape_cast %127 : vector<1x128x128xbf16> to vector<128x128xbf16>
    %c11_68 = arith.constant 11 : index
    %c0_69 = arith.constant 0 : index
    %129 = vector.load %arg3[%c11_68, %c0_69] : memref<24x128xf32, #tpu.memory_space<vmem>>, vector<1x128xf32>
    %130 = arith.truncf %126 : vector<8x128xf32> to vector<8x128xbf16>
    %cst_70 = arith.constant dense<0.000000e+00> : vector<8x128xf32>
    %131 = tpu.matmul %130, %128, %cst_70 {dimension_numbers = #tpu.dot_dimension_numbers<[1], [0], [0], [1], [0, 0, 1, 1], [], []>} : vector<8x128xbf16>, vector<128x128xbf16>, vector<8x128xf32> -> vector<8x128xf32>
    %132 = vector.broadcast %129 : vector<1x128xf32> to vector<8x128xf32>
    %133 = arith.addf %131, %132 : vector<8x128xf32>
    %134 = arith.negf %133 : vector<8x128xf32>
    %135 = math.exp %134 : vector<8x128xf32>
    %cst_71 = arith.constant 1.000000e+00 : f32
    %136 = vector.broadcast %cst_71 : f32 to vector<8x128xf32>
    %137 = arith.addf %136, %135 : vector<8x128xf32>
    %138 = arith.divf %136, %137 : vector<8x128xf32>
    %139 = arith.mulf %117, %138 : vector<8x128xf32>
    %cst_72 = arith.constant 1.000000e-01 : f32
    %140 = vector.broadcast %cst_72 : f32 to vector<8x128xf32>
    %141 = arith.mulf %140, %139 : vector<8x128xf32>
    %142 = arith.addf %97, %141 : vector<8x128xf32>
    %c12 = arith.constant 12 : index
    %c0_73 = arith.constant 0 : index
    %c0_74 = arith.constant 0 : index
    %143 = vector.load %arg2[%c12, %c0_73, %c0_74] : memref<18x128x128xbf16, #tpu.memory_space<vmem>>, vector<1x128x128xbf16>
    %144 = vector.shape_cast %143 : vector<1x128x128xbf16> to vector<128x128xbf16>
    %c12_75 = arith.constant 12 : index
    %c0_76 = arith.constant 0 : index
    %145 = vector.load %arg3[%c12_75, %c0_76] : memref<24x128xf32, #tpu.memory_space<vmem>>, vector<1x128xf32>
    %146 = arith.truncf %142 : vector<8x128xf32> to vector<8x128xbf16>
    %cst_77 = arith.constant dense<0.000000e+00> : vector<8x128xf32>
    %147 = tpu.matmul %146, %144, %cst_77 {dimension_numbers = #tpu.dot_dimension_numbers<[1], [0], [0], [1], [0, 0, 1, 1], [], []>} : vector<8x128xbf16>, vector<128x128xbf16>, vector<8x128xf32> -> vector<8x128xf32>
    %148 = vector.broadcast %145 : vector<1x128xf32> to vector<8x128xf32>
    %149 = arith.addf %147, %148 : vector<8x128xf32>
    %150 = arith.negf %149 : vector<8x128xf32>
    %151 = math.exp %150 : vector<8x128xf32>
    %cst_78 = arith.constant 1.000000e+00 : f32
    %152 = vector.broadcast %cst_78 : f32 to vector<8x128xf32>
    %153 = arith.addf %152, %151 : vector<8x128xf32>
    %154 = arith.divf %152, %153 : vector<8x128xf32>
    %155 = arith.mulf %149, %154 : vector<8x128xf32>
    %c13 = arith.constant 13 : index
    %c0_79 = arith.constant 0 : index
    %c0_80 = arith.constant 0 : index
    %156 = vector.load %arg2[%c13, %c0_79, %c0_80] : memref<18x128x128xbf16, #tpu.memory_space<vmem>>, vector<1x128x128xbf16>
    %157 = vector.shape_cast %156 : vector<1x128x128xbf16> to vector<128x128xbf16>
    %c13_81 = arith.constant 13 : index
    %c0_82 = arith.constant 0 : index
    %158 = vector.load %arg3[%c13_81, %c0_82] : memref<24x128xf32, #tpu.memory_space<vmem>>, vector<1x128xf32>
    %159 = arith.truncf %155 : vector<8x128xf32> to vector<8x128xbf16>
    %cst_83 = arith.constant dense<0.000000e+00> : vector<8x128xf32>
    %160 = tpu.matmul %159, %157, %cst_83 {dimension_numbers = #tpu.dot_dimension_numbers<[1], [0], [0], [1], [0, 0, 1, 1], [], []>} : vector<8x128xbf16>, vector<128x128xbf16>, vector<8x128xf32> -> vector<8x128xf32>
    %161 = vector.broadcast %158 : vector<1x128xf32> to vector<8x128xf32>
    %162 = arith.addf %160, %161 : vector<8x128xf32>
    %163 = arith.negf %162 : vector<8x128xf32>
    %164 = math.exp %163 : vector<8x128xf32>
    %cst_84 = arith.constant 1.000000e+00 : f32
    %165 = vector.broadcast %cst_84 : f32 to vector<8x128xf32>
    %166 = arith.addf %165, %164 : vector<8x128xf32>
    %167 = arith.divf %165, %166 : vector<8x128xf32>
    %168 = arith.mulf %162, %167 : vector<8x128xf32>
    %c14 = arith.constant 14 : index
    %c0_85 = arith.constant 0 : index
    %c0_86 = arith.constant 0 : index
    %169 = vector.load %arg2[%c14, %c0_85, %c0_86] : memref<18x128x128xbf16, #tpu.memory_space<vmem>>, vector<1x128x128xbf16>
    %170 = vector.shape_cast %169 : vector<1x128x128xbf16> to vector<128x128xbf16>
    %c14_87 = arith.constant 14 : index
    %c0_88 = arith.constant 0 : index
    %171 = vector.load %arg3[%c14_87, %c0_88] : memref<24x128xf32, #tpu.memory_space<vmem>>, vector<1x128xf32>
    %172 = arith.truncf %168 : vector<8x128xf32> to vector<8x128xbf16>
    %cst_89 = arith.constant dense<0.000000e+00> : vector<8x128xf32>
    %173 = tpu.matmul %172, %170, %cst_89 {dimension_numbers = #tpu.dot_dimension_numbers<[1], [0], [0], [1], [0, 0, 1, 1], [], []>} : vector<8x128xbf16>, vector<128x128xbf16>, vector<8x128xf32> -> vector<8x128xf32>
    %174 = vector.broadcast %171 : vector<1x128xf32> to vector<8x128xf32>
    %175 = arith.addf %173, %174 : vector<8x128xf32>
    %176 = arith.negf %175 : vector<8x128xf32>
    %177 = math.exp %176 : vector<8x128xf32>
    %cst_90 = arith.constant 1.000000e+00 : f32
    %178 = vector.broadcast %cst_90 : f32 to vector<8x128xf32>
    %179 = arith.addf %178, %177 : vector<8x128xf32>
    %180 = arith.divf %178, %179 : vector<8x128xf32>
    %181 = arith.mulf %175, %180 : vector<8x128xf32>
    %c15 = arith.constant 15 : index
    %c0_91 = arith.constant 0 : index
    %c0_92 = arith.constant 0 : index
    %182 = vector.load %arg2[%c15, %c0_91, %c0_92] : memref<18x128x128xbf16, #tpu.memory_space<vmem>>, vector<1x128x128xbf16>
    %183 = vector.shape_cast %182 : vector<1x128x128xbf16> to vector<128x128xbf16>
    %c15_93 = arith.constant 15 : index
    %c0_94 = arith.constant 0 : index
    %184 = vector.load %arg3[%c15_93, %c0_94] : memref<24x128xf32, #tpu.memory_space<vmem>>, vector<1x128xf32>
    %185 = arith.truncf %181 : vector<8x128xf32> to vector<8x128xbf16>
    %cst_95 = arith.constant dense<0.000000e+00> : vector<8x128xf32>
    %186 = tpu.matmul %185, %183, %cst_95 {dimension_numbers = #tpu.dot_dimension_numbers<[1], [0], [0], [1], [0, 0, 1, 1], [], []>} : vector<8x128xbf16>, vector<128x128xbf16>, vector<8x128xf32> -> vector<8x128xf32>
    %187 = vector.broadcast %184 : vector<1x128xf32> to vector<8x128xf32>
    %188 = arith.addf %186, %187 : vector<8x128xf32>
    %c16 = arith.constant 16 : index
    %c0_96 = arith.constant 0 : index
    %c0_97 = arith.constant 0 : index
    %189 = vector.load %arg2[%c16, %c0_96, %c0_97] : memref<18x128x128xbf16, #tpu.memory_space<vmem>>, vector<1x128x128xbf16>
    %190 = vector.shape_cast %189 : vector<1x128x128xbf16> to vector<128x128xbf16>
    %c16_98 = arith.constant 16 : index
    %c0_99 = arith.constant 0 : index
    %191 = vector.load %arg3[%c16_98, %c0_99] : memref<24x128xf32, #tpu.memory_space<vmem>>, vector<1x128xf32>
    %192 = arith.truncf %188 : vector<8x128xf32> to vector<8x128xbf16>
    %cst_100 = arith.constant dense<0.000000e+00> : vector<8x128xf32>
    %193 = tpu.matmul %192, %190, %cst_100 {dimension_numbers = #tpu.dot_dimension_numbers<[1], [0], [0], [1], [0, 0, 1, 1], [], []>} : vector<8x128xbf16>, vector<128x128xbf16>, vector<8x128xf32> -> vector<8x128xf32>
    %194 = vector.broadcast %191 : vector<1x128xf32> to vector<8x128xf32>
    %195 = arith.addf %193, %194 : vector<8x128xf32>
    %cst_101 = arith.constant 0.000000e+00 : f32
    %196 = vector.broadcast %cst_101 : f32 to vector<8x128xf32>
    %197 = arith.maximumf %195, %196 : vector<8x128xf32>
    %c17 = arith.constant 17 : index
    %c0_102 = arith.constant 0 : index
    %c0_103 = arith.constant 0 : index
    %198 = vector.load %arg2[%c17, %c0_102, %c0_103] : memref<18x128x128xbf16, #tpu.memory_space<vmem>>, vector<1x128x128xbf16>
    %199 = vector.shape_cast %198 : vector<1x128x128xbf16> to vector<128x128xbf16>
    %c17_104 = arith.constant 17 : index
    %c0_105 = arith.constant 0 : index
    %200 = vector.load %arg3[%c17_104, %c0_105] : memref<24x128xf32, #tpu.memory_space<vmem>>, vector<1x128xf32>
    %201 = arith.truncf %197 : vector<8x128xf32> to vector<8x128xbf16>
    %cst_106 = arith.constant dense<0.000000e+00> : vector<8x128xf32>
    %202 = tpu.matmul %201, %199, %cst_106 {dimension_numbers = #tpu.dot_dimension_numbers<[1], [0], [0], [1], [0, 0, 1, 1], [], []>} : vector<8x128xbf16>, vector<128x128xbf16>, vector<8x128xf32> -> vector<8x128xf32>
    %203 = vector.broadcast %200 : vector<1x128xf32> to vector<8x128xf32>
    %204 = arith.addf %202, %203 : vector<8x128xf32>
    %205 = arith.negf %204 : vector<8x128xf32>
    %206 = math.exp %205 : vector<8x128xf32>
    %cst_107 = arith.constant 1.000000e+00 : f32
    %207 = vector.broadcast %cst_107 : f32 to vector<8x128xf32>
    %208 = arith.addf %207, %206 : vector<8x128xf32>
    %209 = arith.divf %207, %208 : vector<8x128xf32>
    %210 = arith.mulf %188, %209 : vector<8x128xf32>
    %cst_108 = arith.constant 1.000000e-01 : f32
    %211 = vector.broadcast %cst_108 : f32 to vector<8x128xf32>
    %212 = arith.mulf %211, %210 : vector<8x128xf32>
    %213 = arith.addf %168, %212 : vector<8x128xf32>
    %214 = arith.negf %213 : vector<8x128xf32>
    %215 = math.exp %214 : vector<8x128xf32>
    %cst_109 = arith.constant 1.000000e+00 : f32
    %216 = vector.broadcast %cst_109 : f32 to vector<8x128xf32>
    %217 = arith.addf %216, %215 : vector<8x128xf32>
    %218 = arith.divf %216, %217 : vector<8x128xf32>
    %219 = arith.mulf %213, %218 : vector<8x128xf32>
    %220 = arith.truncf %219 : vector<8x128xf32> to vector<8x128xbf16>
    %c0_110 = arith.constant 0 : index
    %c0_111 = arith.constant 0 : index
    %221 = vector.load %arg4[%c0_110, %c0_111] : memref<128x128xbf16, #tpu.memory_space<vmem>>, vector<128x128xbf16>
    %cst_112 = arith.constant dense<0.000000e+00> : vector<8x128xf32>
    %222 = tpu.matmul %220, %221, %cst_112 {dimension_numbers = #tpu.dot_dimension_numbers<[1], [0], [0], [1], [0, 0, 1, 1], [], []>} : vector<8x128xbf16>, vector<128x128xbf16>, vector<8x128xf32> -> vector<8x128xf32>
    %c0_113 = arith.constant 0 : index
    %c0_114 = arith.constant 0 : index
    %223 = vector.load %arg5[%c0_113, %c0_114] : memref<8x128xf32, #tpu.memory_space<vmem>>, vector<1x128xf32>
    %224 = vector.broadcast %223 : vector<1x128xf32> to vector<8x128xf32>
    %225 = arith.addf %222, %224 : vector<8x128xf32>
    %c0_115 = arith.constant 0 : index
    %c0_116 = arith.constant 0 : index
    %226 = vector.load %arg6[%c0_115, %c0_116] : memref<8x128xf32, #tpu.memory_space<vmem>>, vector<8x128xf32>
    tpu.vector_store %arg6[%c0_115, %c0_116], %225 {strides = array<i32>} : memref<8x128xf32, #tpu.memory_space<vmem>>, vector<8x128xf32>,
    return
  }
  func.func @transform_0(%arg0: i32) -> (i32, i32) {
    %c0_i32 = arith.constant 0 : i32
    %c0_i32_0 = arith.constant 0 : i32
    return %arg0, %c0_i32 : i32, i32
  }
  func.func @transform_1(%arg0: i32) -> (i32, i32, i32) {
    %c0_i32 = arith.constant 0 : i32
    %c0_i32_0 = arith.constant 0 : i32
    %c0_i32_1 = arith.constant 0 : i32
    %c0_i32_2 = arith.constant 0 : i32
    return %c0_i32, %c0_i32_0, %c0_i32_1 : i32, i32, i32
  }
  func.func @transform_2(%arg0: i32) -> (i32, i32) {
    %c0_i32 = arith.constant 0 : i32
    %c0_i32_0 = arith.constant 0 : i32
    %c0_i32_1 = arith.constant 0 : i32
    return %c0_i32, %c0_i32_0 : i32, i32
  }
  func.func @transform_3(%arg0: i32) -> (i32, i32) {
    %c0_i32 = arith.constant 0 : i32
    %c0_i32_0 = arith.constant 0 : i32
    %c0_i32_1 = arith.constant 0 : i32
    return %c0_i32, %c0_i32_0 : i32, i32
  }
  func.func @transform_4(%arg0: i32) -> (i32, i32) {
    %c0_i32 = arith.constant 0 : i32
    %c0_i32_0 = arith.constant 0 : i32
    %c0_i32_1 = arith.constant 0 : i32
    return %c0_i32, %c0_i32_0 : i32, i32
  }
  func.func @transform_5(%arg0: i32) -> (i32, i32) {
    %c0_i32 = arith.constant 0 : i32
    %c0_i32_0 = arith.constant 0 : i32
    return %arg0, %c0_i32 : i32, i32
  }
}

</mosaic_0001>

<llo_original>
// kernel: tpu_custom_call.1
$region0: #{tpu_custom_call.1}
  #allocation0 [shape = 'u32[]', space=smem, size = 0x4, offset = 0x4, fixed_abs, tag = 'smem constant byte address 0x4 - core index']
  #allocation1 [shape = 'u32[144,128]{1,0:T(1,128)}', space=vmem, size = 0x12000, scoped, tag = 'internal scratch']
  %s0 = inlined_call_operand.hbm [shape: f32[8,128], index: 0, kind: input, shape index: {}]
  %s1 = inlined_call_operand.hbm [shape: bf16[18,128,128], index: 1, kind: input, shape index: {}]
  %s2 = inlined_call_operand.hbm [shape: f32[24,128], index: 2, kind: input, shape index: {}]
  %s3 = inlined_call_operand.hbm [shape: bf16[128,128], index: 3, kind: input, shape index: {}]
  %s4 = inlined_call_operand.vmem [shape: f32[8,128], index: 4, kind: input, shape index: {}]
  %s5 = inlined_call_operand.hbm [shape: f32[8,128], index: 5, kind: output, shape index: {}]
  %s6 = sld [smem:[#allocation0]]
  $region46: #{tpu_custom_call.1} parent=0
    _
  %s8 = ssub.s32 1, %s6
  %s9 = scalar_select 0, %s8, %s6
  $region1: #{tpu_custom_call.1} parent=0
    #allocation2 [shape = 'u8[4096]{0}', space=vmem, size = 0x1000, scoped, tag = 'input window, operand 0, single buffered']
    #allocation3 [shape = 's32[1]{0}', space=sflag, size = 0x4, scoped, tag = 'scoped memory for tpu_custom_call.1']
    #allocation4 [shape = 's32[1]{0}', space=sflag, size = 0x4, scoped, tag = 'scoped memory for tpu_custom_call.1']
    #allocation5 [shape = 'u8[589824]{0}', space=vmem, size = 0x90000, scoped, tag = 'input window, operand 1, single buffered']
    #allocation6 [shape = 's32[1]{0}', space=sflag, size = 0x4, scoped, tag = 'scoped memory for tpu_custom_call.1']
    #allocation7 [shape = 'u8[12288]{0}', space=vmem, size = 0x3000, scoped, tag = 'input window, operand 2, single buffered']
    #allocation8 [shape = 'u8[32768]{0}', space=vmem, size = 0x8000, scoped, tag = 'input window, operand 3, single buffered']
    #allocation9 [shape = 's32[1]{0}', space=sflag, size = 0x4, scoped, tag = 'scoped memory for tpu_custom_call.1']
    #allocation10 [shape = 'u8[4096]{0}', space=vmem, size = 0x1000, scoped, tag = 'output window, operand 0, single buffered']
    %10 = vsyncpa [#allocation3], 0
    %11 = vsyncpa [#allocation6], 0
    %12 = vsyncpa [#allocation9], 0
    %13 = vsyncpa [#allocation4], 0
    // Predicated region
    $region2: #{tpu_custom_call.1} parent=1 // pred_check
      _
    $region3: #{tpu_custom_call.1} parent=1 // pred_check_branch
      %15 = sbr.rel (0) target = $region5
    $region4: #{tpu_custom_call.1} parent=1 // pred_region
      %s17 = ssub.s32 128, 128
      %18 = vsyncadd [#allocation3], %s17
      %s20 = sshll.u32 [#allocation2], 4
      %s21 = int_to_ptr.vmem [resolvable:$true] %s20
      %23 = dma.hbm_to_vmem [thread:$0]  %s0, 128, %s21, [#allocation3]
    $region5: #{tpu_custom_call.1} parent=1 // pred_fallthru
      _
    // Predicated region
    $region6: #{tpu_custom_call.1} parent=1 // pred_check
      _
    $region7: #{tpu_custom_call.1} parent=1 // pred_check_branch
      %25 = sbr.rel (0) target = $region9
    $region8: #{tpu_custom_call.1} parent=1 // pred_region
      %s27 = ssub.s32 18432, 18432
      %28 = vsyncadd [#allocation6], %s27
      %s29 = sshll.u32 [#allocation5], 4
      %s30 = int_to_ptr.vmem [resolvable:$true] %s29
      %35 = dma.hbm_to_vmem [thread:$0]  %s1, 18432, %s30, [#allocation6], 64, 64, 4
    $region9: #{tpu_custom_call.1} parent=1 // pred_fallthru
      _
    // Predicated region
    $region10: #{tpu_custom_call.1} parent=1 // pred_check
      _
    $region11: #{tpu_custom_call.1} parent=1 // pred_check_branch
      %37 = sbr.rel (0) target = $region13
    $region12: #{tpu_custom_call.1} parent=1 // pred_region
      %s39 = ssub.s32 384, 384
      %40 = vsyncadd [#allocation6], %s39
      %s41 = sshll.u32 [#allocation7], 4
      %s42 = int_to_ptr.vmem [resolvable:$true] %s41
      %47 = dma.hbm_to_vmem [thread:$0]  %s2, 384, %s42, [#allocation6], 128, 128, 8
    $region13: #{tpu_custom_call.1} parent=1 // pred_fallthru
      _
    // Predicated region
    $region14: #{tpu_custom_call.1} parent=1 // pred_check
      _
    $region15: #{tpu_custom_call.1} parent=1 // pred_check_branch
      %49 = sbr.rel (0) target = $region17
    $region16: #{tpu_custom_call.1} parent=1 // pred_region
      %s51 = ssub.s32 1024, 1024
      %52 = vsyncadd [#allocation9], %s51
      %s53 = sshll.u32 [#allocation8], 4
      %s54 = int_to_ptr.vmem [resolvable:$true] %s53
      %59 = dma.hbm_to_vmem [thread:$0]  %s3, 1024, %s54, [#allocation9], 64, 64, 4
    $region17: #{tpu_custom_call.1} parent=1 // pred_fallthru
      _
    // Predicated region
    $region18: #{tpu_custom_call.1} parent=1 // pred_check
      _
    $region19: #{tpu_custom_call.1} parent=1 // pred_check_branch
      %61 = sbr.rel (0) target = $region21
    $region20: #{tpu_custom_call.1} parent=1 // pred_region
      _
    $region21: #{tpu_custom_call.1} parent=1 // pred_fallthru
      _
    // Predicated region
    $region22: #{tpu_custom_call.1} parent=1 // pred_check
      _
    $region23: #{tpu_custom_call.1} parent=1 // pred_check_branch
      %63 = sbr.rel (0) target = $region25
    $region24: #{tpu_custom_call.1} parent=1 // pred_region
      %64 = dma.done [#allocation3], 128
    $region25: #{tpu_custom_call.1} parent=1 // pred_fallthru
      _
    // Predicated region
    $region26: #{tpu_custom_call.1} parent=1 // pred_check
      _
    $region27: #{tpu_custom_call.1} parent=1 // pred_check_branch
      %66 = sbr.rel (0) target = $region29
    $region28: #{tpu_custom_call.1} parent=1 // pred_region
      %67 = dma.done [#allocation6], 18432
    $region29: #{tpu_custom_call.1} parent=1 // pred_fallthru
      _
    // Predicated region
    $region30: #{tpu_custom_call.1} parent=1 // pred_check
      _
    $region31: #{tpu_custom_call.1} parent=1 // pred_check_branch
      %69 = sbr.rel (0) target = $region33
    $region32: #{tpu_custom_call.1} parent=1 // pred_region
      %70 = dma.done [#allocation6], 384
    $region33: #{tpu_custom_call.1} parent=1 // pred_fallthru
      _
    // Predicated region
    $region34: #{tpu_custom_call.1} parent=1 // pred_check
      _
    $region35: #{tpu_custom_call.1} parent=1 // pred_check_branch
      %72 = sbr.rel (0) target = $region37
    $region36: #{tpu_custom_call.1} parent=1 // pred_region
      %73 = dma.done [#allocation9], 1024
    $region37: #{tpu_custom_call.1} parent=1 // pred_fallthru
      _
    %v75 = vld [vmem:[#allocation2] sm:$0xff]
    %v76 = vld [vmem:[#allocation5] sm:$0xf]
    %v77 = vld [vmem:[#allocation5 + $0x4] sm:$0xf]
    %v78 = vld [vmem:[#allocation5 + $0x8] sm:$0xf]
    %v79 = vld [vmem:[#allocation5 + $0xc] sm:$0xf]
    %v80 = vld [vmem:[#allocation5 + $0x10] sm:$0xf]
    %v81 = vld [vmem:[#allocation5 + $0x14] sm:$0xf]
    %v82 = vld [vmem:[#allocation5 + $0x18] sm:$0xf]
    %v83 = vld [vmem:[#allocation5 + $0x1c] sm:$0xf]
    %v84 = vld [vmem:[#allocation5 + $0x20] sm:$0xf]
    %v85 = vld [vmem:[#allocation5 + $0x24] sm:$0xf]
    %v86 = vld [vmem:[#allocation5 + $0x28] sm:$0xf]
    %v87 = vld [vmem:[#allocation5 + $0x2c] sm:$0xf]
    %v88 = vld [vmem:[#allocation5 + $0x30] sm:$0xf]
    %v89 = vld [vmem:[#allocation5 + $0x34] sm:$0xf]
    %v90 = vld [vmem:[#allocation5 + $0x38] sm:$0xf]
    %v91 = vld [vmem:[#allocation5 + $0x3c] sm:$0xf]
    %v92 = vld [vmem:[#allocation7] sm:$0x1]
    %v93 = vpack.c.bf16 %v75, %v75
    %v94 = vlaneseq
    %v95 = vshrl.u32 %v94, 7
    %v96 = vsub.s32 0, %v95
    %v97 = vrot.slane %v92, %v96
    %v114 = vunpack.c.l.b16 %v76
    %v115 = vunpack.c.l.b16 %v77
    %v116 = vunpack.c.l.b16 %v78
    %v117 = vunpack.c.l.b16 %v79
    %v118 = vunpack.c.l.b16 %v80
    %v119 = vunpack.c.l.b16 %v81
    %v120 = vunpack.c.l.b16 %v82
    %v121 = vunpack.c.l.b16 %v83
    %v122 = vunpack.c.l.b16 %v84
    %v123 = vunpack.c.l.b16 %v85
    %v124 = vunpack.c.l.b16 %v86
    %v125 = vunpack.c.l.b16 %v87
    %v126 = vunpack.c.l.b16 %v88
    %v127 = vunpack.c.l.b16 %v89
    %v128 = vunpack.c.l.b16 %v90
    %v129 = vunpack.c.l.b16 %v91
    %v130 = vpack.c.b16 %v115, %v114
    %v131 = vpack.c.b16 %v117, %v116
    %v132 = vpack.c.b16 %v119, %v118
    %v133 = vpack.c.b16 %v121, %v120
    %v134 = vpack.c.b16 %v123, %v122
    %v135 = vpack.c.b16 %v125, %v124
    %v136 = vpack.c.b16 %v127, %v126
    %v137 = vpack.c.b16 %v129, %v128
    %146 = vmatprep.subr.bf16.mxu0 0
    %147 = vmatpush1.bf16.msra.mxu0 %v130
    %148 = vmatprep.subr.bf16.mxu0 0
    %149 = vmatpush1.bf16.msra.mxu0 %v131
    %150 = vmatprep.subr.bf16.mxu0 0
    %151 = vmatpush1.bf16.msra.mxu0 %v132
    %152 = vmatprep.subr.bf16.mxu0 0
    %153 = vmatpush1.bf16.msra.mxu0 %v133
    %154 = vmatprep.subr.bf16.mxu0 0
    %155 = vmatpush1.bf16.msra.mxu0 %v134
    %156 = vmatprep.subr.bf16.mxu0 0
    %157 = vmatpush1.bf16.msra.mxu0 %v135
    %158 = vmatprep.subr.bf16.mxu0 0
    %159 = vmatpush1.bf16.msra.mxu0 %v136
    %160 = vmatprep.subr.bf16.mxu0 0
    %161 = vmatpush1.bf16.msra.mxu0 %v137
    %162 = vmatprep.subr.bf16.mxu0 0
    %163 = vmatpush1.bf16.msra.mxu0 0
    %164 = vmatprep.subr.bf16.mxu0 0
    %165 = vmatpush1.bf16.msra.mxu0 0
    %166 = vmatprep.subr.bf16.mxu0 0
    %167 = vmatpush1.bf16.msra.mxu0 0
    %168 = vmatprep.subr.bf16.mxu0 0
    %169 = vmatpush1.bf16.msra.mxu0 0
    %170 = vmatprep.subr.bf16.mxu0 0
    %171 = vmatpush1.bf16.msra.mxu0 0
    %172 = vmatprep.subr.bf16.mxu0 0
    %173 = vmatpush1.bf16.msra.mxu0 0
    %174 = vmatprep.subr.bf16.mxu0 0
    %175 = vmatpush1.bf16.msra.mxu0 0
    %176 = vmatprep.subr.bf16.mxu0 0
    %177 = vmatpush1.bf16.msra.mxu0 0
    %178 = vmatprep.mubr.bf16.mxu0 0
    %179 = vmatmul.mubr.bf16.gmra.mrb[0].mxu0 %v93
    %v180 = vpop.f32.mrb[0].mxu0
    %v181 = vadd.f32 %v97, %v180
    %v182 = vpop.f32.mrb[0].mxu0
    %v183 = vpop.f32.mrb[0].mxu0
    %v184 = vpop.f32.mrb[0].mxu0
    %185 = vdwg.mxu0
    %v186 = vxor.u32 %v181, 2147483648
    %v187 = vmul.f32 %v186, 1.442695
    %v188 = vpow.pop %v187
    %v189 = vadd.f32 %v188, 1.0
    %v190 = vrcp.pop %v189
    %v191 = vmul.f32 1.0, %v190
    %v192 = vmul.f32 %v181, %v191
    %s193 = scalar_lea.vmem [#allocation5], 64
    %v194 = vld [vmem:[%s193] sm:$0xf]
    %v195 = vld [vmem:[%s193 + $0x4] sm:$0xf]
    %v196 = vld [vmem:[%s193 + $0x8] sm:$0xf]
    %v197 = vld [vmem:[%s193 + $0xc] sm:$0xf]
    %v198 = vld [vmem:[%s193 + $0x10] sm:$0xf]
    %v199 = vld [vmem:[%s193 + $0x14] sm:$0xf]
    %v200 = vld [vmem:[%s193 + $0x18] sm:$0xf]
    %v201 = vld [vmem:[%s193 + $0x1c] sm:$0xf]
    %v202 = vld [vmem:[%s193 + $0x20] sm:$0xf]
    %v203 = vld [vmem:[%s193 + $0x24] sm:$0xf]
    %v204 = vld [vmem:[%s193 + $0x28] sm:$0xf]
    %v205 = vld [vmem:[%s193 + $0x2c] sm:$0xf]
    %v206 = vld [vmem:[%s193 + $0x30] sm:$0xf]
    %v207 = vld [vmem:[%s193 + $0x34] sm:$0xf]
    %v208 = vld [vmem:[%s193 + $0x38] sm:$0xf]
    %v209 = vld [vmem:[%s193 + $0x3c] sm:$0xf]
    %v210 = vld [vmem:[#allocation7 + $0x1] sm:$0x1]
    %v211 = vpack.c.bf16 %v192, %v192
    %v212 = vlaneseq
    %v213 = vshrl.u32 %v212, 7
    %v214 = vsub.s32 0, %v213
    %v215 = vrot.slane %v210, %v214
    %v232 = vunpack.c.l.b16 %v194
    %v233 = vunpack.c.l.b16 %v195
    %v234 = vunpack.c.l.b16 %v196
    %v235 = vunpack.c.l.b16 %v197
    %v236 = vunpack.c.l.b16 %v198
    %v237 = vunpack.c.l.b16 %v199
    %v238 = vunpack.c.l.b16 %v200
    %v239 = vunpack.c.l.b16 %v201
    %v240 = vunpack.c.l.b16 %v202
    %v241 = vunpack.c.l.b16 %v203
    %v242 = vunpack.c.l.b16 %v204
    %v243 = vunpack.c.l.b16 %v205
    %v244 = vunpack.c.l.b16 %v206
    %v245 = vunpack.c.l.b16 %v207
    %v246 = vunpack.c.l.b16 %v208
    %v247 = vunpack.c.l.b16 %v209
    %v248 = vpack.c.b16 %v233, %v232
    %v249 = vpack.c.b16 %v235, %v234
    %v250 = vpack.c.b16 %v237, %v236
    %v251 = vpack.c.b16 %v239, %v238
    %v252 = vpack.c.b16 %v241, %v240
    %v253 = vpack.c.b16 %v243, %v242
    %v254 = vpack.c.b16 %v245, %v244
    %v255 = vpack.c.b16 %v247, %v246
    %264 = vmatprep.subr.bf16.mxu0 0
    %265 = vmatpush1.bf16.msra.mxu0 %v248
    %266 = vmatprep.subr.bf16.mxu0 0
    %267 = vmatpush1.bf16.msra.mxu0 %v249
    %268 = vmatprep.subr.bf16.mxu0 0
    %269 = vmatpush1.bf16.msra.mxu0 %v250
    %270 = vmatprep.subr.bf16.mxu0 0
    %271 = vmatpush1.bf16.msra.mxu0 %v251
    %272 = vmatprep.subr.bf16.mxu0 0
    %273 = vmatpush1.bf16.msra.mxu0 %v252
    %274 = vmatprep.subr.bf16.mxu0 0
    %275 = vmatpush1.bf16.msra.mxu0 %v253
    %276 = vmatprep.subr.bf16.mxu0 0
    %277 = vmatpush1.bf16.msra.mxu0 %v254
    %278 = vmatprep.subr.bf16.mxu0 0
    %279 = vmatpush1.bf16.msra.mxu0 %v255
    %280 = vmatprep.subr.bf16.mxu0 0
    %281 = vmatpush1.bf16.msra.mxu0 0
    %282 = vmatprep.subr.bf16.mxu0 0
    %283 = vmatpush1.bf16.msra.mxu0 0
    %284 = vmatprep.subr.bf16.mxu0 0
    %285 = vmatpush1.bf16.msra.mxu0 0
    %286 = vmatprep.subr.bf16.mxu0 0
    %287 = vmatpush1.bf16.msra.mxu0 0
    %288 = vmatprep.subr.bf16.mxu0 0
    %289 = vmatpush1.bf16.msra.mxu0 0
    %290 = vmatprep.subr.bf16.mxu0 0
    %291 = vmatpush1.bf16.msra.mxu0 0
    %292 = vmatprep.subr.bf16.mxu0 0
    %293 = vmatpush1.bf16.msra.mxu0 0
    %294 = vmatprep.subr.bf16.mxu0 0
    %295 = vmatpush1.bf16.msra.mxu0 0
    %296 = vmatprep.mubr.bf16.mxu0 0
    %297 = vmatmul.mubr.bf16.gmra.mrb[0].mxu0 %v211
    %v298 = vpop.f32.mrb[0].mxu0
    %v299 = vadd.f32 %v215, %v298
    %v300 = vpop.f32.mrb[0].mxu0
    %v301 = vpop.f32.mrb[0].mxu0
    %v302 = vpop.f32.mrb[0].mxu0
    %303 = vdwg.mxu0
    %v304 = vxor.u32 %v299, 2147483648
    %v305 = vmul.f32 %v304, 1.442695
    %v306 = vpow.pop %v305
    %v307 = vadd.f32 %v306, 1.0
    %v308 = vrcp.pop %v307
    %v309 = vmul.f32 1.0, %v308
    %v310 = vmul.f32 %v299, %v309
    %s311 = scalar_lea.vmem [#allocation5], 128
    %v312 = vld [vmem:[%s311] sm:$0xf]
    %v313 = vld [vmem:[%s311 + $0x4] sm:$0xf]
    %v314 = vld [vmem:[%s311 + $0x8] sm:$0xf]
    %v315 = vld [vmem:[%s311 + $0xc] sm:$0xf]
    %v316 = vld [vmem:[%s311 + $0x10] sm:$0xf]
    %v317 = vld [vmem:[%s311 + $0x14] sm:$0xf]
    %v318 = vld [vmem:[%s311 + $0x18] sm:$0xf]
    %v319 = vld [vmem:[%s311 + $0x1c] sm:$0xf]
    %v320 = vld [vmem:[%s311 + $0x20] sm:$0xf]
    %v321 = vld [vmem:[%s311 + $0x24] sm:$0xf]
    %v322 = vld [vmem:[%s311 + $0x28] sm:$0xf]
    %v323 = vld [vmem:[%s311 + $0x2c] sm:$0xf]
    %v324 = vld [vmem:[%s311 + $0x30] sm:$0xf]
    %v325 = vld [vmem:[%s311 + $0x34] sm:$0xf]
    %v326 = vld [vmem:[%s311 + $0x38] sm:$0xf]
    %v327 = vld [vmem:[%s311 + $0x3c] sm:$0xf]
    %v328 = vld [vmem:[#allocation7 + $0x2] sm:$0x1]
    %v329 = vpack.c.bf16 %v310, %v310
    %v330 = vlaneseq
    %v331 = vshrl.u32 %v330, 7
    %v332 = vsub.s32 0, %v331
    %v333 = vrot.slane %v328, %v332
    %v350 = vunpack.c.l.b16 %v312
    %v351 = vunpack.c.l.b16 %v313
    %v352 = vunpack.c.l.b16 %v314
    %v353 = vunpack.c.l.b16 %v315
    %v354 = vunpack.c.l.b16 %v316
    %v355 = vunpack.c.l.b16 %v317
    %v356 = vunpack.c.l.b16 %v318
    %v357 = vunpack.c.l.b16 %v319
    %v358 = vunpack.c.l.b16 %v320
    %v359 = vunpack.c.l.b16 %v321
    %v360 = vunpack.c.l.b16 %v322
    %v361 = vunpack.c.l.b16 %v323
    %v362 = vunpack.c.l.b16 %v324
    %v363 = vunpack.c.l.b16 %v325
    %v364 = vunpack.c.l.b16 %v326
    %v365 = vunpack.c.l.b16 %v327
    %v366 = vpack.c.b16 %v351, %v350
    %v367 = vpack.c.b16 %v353, %v352
    %v368 = vpack.c.b16 %v355, %v354
    %v369 = vpack.c.b16 %v357, %v356
    %v370 = vpack.c.b16 %v359, %v358
    %v371 = vpack.c.b16 %v361, %v360
    %v372 = vpack.c.b16 %v363, %v362
    %v373 = vpack.c.b16 %v365, %v364
    %382 = vmatprep.subr.bf16.mxu0 0
    %383 = vmatpush1.bf16.msra.mxu0 %v366
    %384 = vmatprep.subr.bf16.mxu0 0
    %385 = vmatpush1.bf16.msra.mxu0 %v367
    %386 = vmatprep.subr.bf16.mxu0 0
    %387 = vmatpush1.bf16.msra.mxu0 %v368
    %388 = vmatprep.subr.bf16.mxu0 0
    %389 = vmatpush1.bf16.msra.mxu0 %v369
    %390 = vmatprep.subr.bf16.mxu0 0
    %391 = vmatpush1.bf16.msra.mxu0 %v370
    %392 = vmatprep.subr.bf16.mxu0 0
    %393 = vmatpush1.bf16.msra.mxu0 %v371
    %394 = vmatprep.subr.bf16.mxu0 0
    %395 = vmatpush1.bf16.msra.mxu0 %v372
    %396 = vmatprep.subr.bf16.mxu0 0
    %397 = vmatpush1.bf16.msra.mxu0 %v373
    %398 = vmatprep.subr.bf16.mxu0 0
    %399 = vmatpush1.bf16.msra.mxu0 0
    %400 = vmatprep.subr.bf16.mxu0 0
    %401 = vmatpush1.bf16.msra.mxu0 0
    %402 = vmatprep.subr.bf16.mxu0 0
    %403 = vmatpush1.bf16.msra.mxu0 0
    %404 = vmatprep.subr.bf16.mxu0 0
    %405 = vmatpush1.bf16.msra.mxu0 0
    %406 = vmatprep.subr.bf16.mxu0 0
    %407 = vmatpush1.bf16.msra.mxu0 0
    %408 = vmatprep.subr.bf16.mxu0 0
    %409 = vmatpush1.bf16.msra.mxu0 0
    %410 = vmatprep.subr.bf16.mxu0 0
    %411 = vmatpush1.bf16.msra.mxu0 0
    %412 = vmatprep.subr.bf16.mxu0 0
    %413 = vmatpush1.bf16.msra.mxu0 0
    %414 = vmatprep.mubr.bf16.mxu0 0
    %415 = vmatmul.mubr.bf16.gmra.mrb[0].mxu0 %v329
    %v416 = vpop.f32.mrb[0].mxu0
    %v417 = vadd.f32 %v333, %v416
    %v418 = vpop.f32.mrb[0].mxu0
    %v419 = vpop.f32.mrb[0].mxu0
    %v420 = vpop.f32.mrb[0].mxu0
    %421 = vdwg.mxu0
    %v422 = vxor.u32 %v417, 2147483648
    %v423 = vmul.f32 %v422, 1.442695
    %v424 = vpow.pop %v423
    %v425 = vadd.f32 %v424, 1.0
    %v426 = vrcp.pop %v425
    %v427 = vmul.f32 1.0, %v426
    %v428 = vmul.f32 %v417, %v427
    %s429 = scalar_lea.vmem [#allocation5], 192
    %v430 = vld [vmem:[%s429] sm:$0xf]
    %v431 = vld [vmem:[%s429 + $0x4] sm:$0xf]
    %v432 = vld [vmem:[%s429 + $0x8] sm:$0xf]
    %v433 = vld [vmem:[%s429 + $0xc] sm:$0xf]
    %v434 = vld [vmem:[%s429 + $0x10] sm:$0xf]
    %v435 = vld [vmem:[%s429 + $0x14] sm:$0xf]
    %v436 = vld [vmem:[%s429 + $0x18] sm:$0xf]
    %v437 = vld [vmem:[%s429 + $0x1c] sm:$0xf]
    %v438 = vld [vmem:[%s429 + $0x20] sm:$0xf]
    %v439 = vld [vmem:[%s429 + $0x24] sm:$0xf]
    %v440 = vld [vmem:[%s429 + $0x28] sm:$0xf]
    %v441 = vld [vmem:[%s429 + $0x2c] sm:$0xf]
    %v442 = vld [vmem:[%s429 + $0x30] sm:$0xf]
    %v443 = vld [vmem:[%s429 + $0x34] sm:$0xf]
    %v444 = vld [vmem:[%s429 + $0x38] sm:$0xf]
    %v445 = vld [vmem:[%s429 + $0x3c] sm:$0xf]
    %v446 = vld [vmem:[#allocation7 + $0x3] sm:$0x1]
    %v447 = vpack.c.bf16 %v428, %v428
    %v448 = vlaneseq
    %v449 = vshrl.u32 %v448, 7
    %v450 = vsub.s32 0, %v449
    %v451 = vrot.slane %v446, %v450
    %v468 = vunpack.c.l.b16 %v430
    %v469 = vunpack.c.l.b16 %v431
    %v470 = vunpack.c.l.b16 %v432
    %v471 = vunpack.c.l.b16 %v433
    %v472 = vunpack.c.l.b16 %v434
    %v473 = vunpack.c.l.b16 %v435
    %v474 = vunpack.c.l.b16 %v436
    %v475 = vunpack.c.l.b16 %v437
    %v476 = vunpack.c.l.b16 %v438
    %v477 = vunpack.c.l.b16 %v439
    %v478 = vunpack.c.l.b16 %v440
    %v479 = vunpack.c.l.b16 %v441
    %v480 = vunpack.c.l.b16 %v442
    %v481 = vunpack.c.l.b16 %v443
    %v482 = vunpack.c.l.b16 %v444
    %v483 = vunpack.c.l.b16 %v445
    %v484 = vpack.c.b16 %v469, %v468
    %v485 = vpack.c.b16 %v471, %v470
    %v486 = vpack.c.b16 %v473, %v472
    %v487 = vpack.c.b16 %v475, %v474
    %v488 = vpack.c.b16 %v477, %v476
    %v489 = vpack.c.b16 %v479, %v478
    %v490 = vpack.c.b16 %v481, %v480
    %v491 = vpack.c.b16 %v483, %v482
    %500 = vmatprep.subr.bf16.mxu0 0
    %501 = vmatpush1.bf16.msra.mxu0 %v484
    %502 = vmatprep.subr.bf16.mxu0 0
    %503 = vmatpush1.bf16.msra.mxu0 %v485
    %504 = vmatprep.subr.bf16.mxu0 0
    %505 = vmatpush1.bf16.msra.mxu0 %v486
    %506 = vmatprep.subr.bf16.mxu0 0
    %507 = vmatpush1.bf16.msra.mxu0 %v487
    %508 = vmatprep.subr.bf16.mxu0 0
    %509 = vmatpush1.bf16.msra.mxu0 %v488
    %510 = vmatprep.subr.bf16.mxu0 0
    %511 = vmatpush1.bf16.msra.mxu0 %v489
    %512 = vmatprep.subr.bf16.mxu0 0
    %513 = vmatpush1.bf16.msra.mxu0 %v490
    %514 = vmatprep.subr.bf16.mxu0 0
    %515 = vmatpush1.bf16.msra.mxu0 %v491
    %516 = vmatprep.subr.bf16.mxu0 0
    %517 = vmatpush1.bf16.msra.mxu0 0
    %518 = vmatprep.subr.bf16.mxu0 0
    %519 = vmatpush1.bf16.msra.mxu0 0
    %520 = vmatprep.subr.bf16.mxu0 0
    %521 = vmatpush1.bf16.msra.mxu0 0
    %522 = vmatprep.subr.bf16.mxu0 0
    %523 = vmatpush1.bf16.msra.mxu0 0
    %524 = vmatprep.subr.bf16.mxu0 0
    %525 = vmatpush1.bf16.msra.mxu0 0
    %526 = vmatprep.subr.bf16.mxu0 0
    %527 = vmatpush1.bf16.msra.mxu0 0
    %528 = vmatprep.subr.bf16.mxu0 0
    %529 = vmatpush1.bf16.msra.mxu0 0
    %530 = vmatprep.subr.bf16.mxu0 0
    %531 = vmatpush1.bf16.msra.mxu0 0
    %532 = vmatprep.mubr.bf16.mxu0 0
    %533 = vmatmul.mubr.bf16.gmra.mrb[0].mxu0 %v447
    %v534 = vpop.f32.mrb[0].mxu0
    %v535 = vadd.f32 %v451, %v534
    %v536 = vpop.f32.mrb[0].mxu0
    %v537 = vpop.f32.mrb[0].mxu0
    %v538 = vpop.f32.mrb[0].mxu0
    %539 = vdwg.mxu0
    %s540 = scalar_lea.vmem [#allocation5], 256
    %v541 = vld [vmem:[%s540] sm:$0xf]
    %v542 = vld [vmem:[%s540 + $0x4] sm:$0xf]
    %v543 = vld [vmem:[%s540 + $0x8] sm:$0xf]
    %v544 = vld [vmem:[%s540 + $0xc] sm:$0xf]
    %v545 = vld [vmem:[%s540 + $0x10] sm:$0xf]
    %v546 = vld [vmem:[%s540 + $0x14] sm:$0xf]
    %v547 = vld [vmem:[%s540 + $0x18] sm:$0xf]
    %v548 = vld [vmem:[%s540 + $0x1c] sm:$0xf]
    %v549 = vld [vmem:[%s540 + $0x20] sm:$0xf]
    %v550 = vld [vmem:[%s540 + $0x24] sm:$0xf]
    %v551 = vld [vmem:[%s540 + $0x28] sm:$0xf]
    %v552 = vld [vmem:[%s540 + $0x2c] sm:$0xf]
    %v553 = vld [vmem:[%s540 + $0x30] sm:$0xf]
    %v554 = vld [vmem:[%s540 + $0x34] sm:$0xf]
    %v555 = vld [vmem:[%s540 + $0x38] sm:$0xf]
    %v556 = vld [vmem:[%s540 + $0x3c] sm:$0xf]
    %v557 = vld [vmem:[#allocation7 + $0x4] sm:$0x1]
    %v558 = vpack.c.bf16 %v535, %v535
    %v559 = vlaneseq
    %v560 = vshrl.u32 %v559, 7
    %v561 = vsub.s32 0, %v560
    %v562 = vrot.slane %v557, %v561
    %v579 = vunpack.c.l.b16 %v541
    %v580 = vunpack.c.l.b16 %v542
    %v581 = vunpack.c.l.b16 %v543
    %v582 = vunpack.c.l.b16 %v544
    %v583 = vunpack.c.l.b16 %v545
    %v584 = vunpack.c.l.b16 %v546
    %v585 = vunpack.c.l.b16 %v547
    %v586 = vunpack.c.l.b16 %v548
    %v587 = vunpack.c.l.b16 %v549
    %v588 = vunpack.c.l.b16 %v550
    %v589 = vunpack.c.l.b16 %v551
    %v590 = vunpack.c.l.b16 %v552
    %v591 = vunpack.c.l.b16 %v553
    %v592 = vunpack.c.l.b16 %v554
    %v593 = vunpack.c.l.b16 %v555
    %v594 = vunpack.c.l.b16 %v556
    %v595 = vpack.c.b16 %v580, %v579
    %v596 = vpack.c.b16 %v582, %v581
    %v597 = vpack.c.b16 %v584, %v583
    %v598 = vpack.c.b16 %v586, %v585
    %v599 = vpack.c.b16 %v588, %v587
    %v600 = vpack.c.b16 %v590, %v589
    %v601 = vpack.c.b16 %v592, %v591
    %v602 = vpack.c.b16 %v594, %v593
    %611 = vmatprep.subr.bf16.mxu0 0
    %612 = vmatpush1.bf16.msra.mxu0 %v595
    %613 = vmatprep.subr.bf16.mxu0 0
    %614 = vmatpush1.bf16.msra.mxu0 %v596
    %615 = vmatprep.subr.bf16.mxu0 0
    %616 = vmatpush1.bf16.msra.mxu0 %v597
    %617 = vmatprep.subr.bf16.mxu0 0
    %618 = vmatpush1.bf16.msra.mxu0 %v598
    %619 = vmatprep.subr.bf16.mxu0 0
    %620 = vmatpush1.bf16.msra.mxu0 %v599
    %621 = vmatprep.subr.bf16.mxu0 0
    %622 = vmatpush1.bf16.msra.mxu0 %v600
    %623 = vmatprep.subr.bf16.mxu0 0
    %624 = vmatpush1.bf16.msra.mxu0 %v601
    %625 = vmatprep.subr.bf16.mxu0 0
    %626 = vmatpush1.bf16.msra.mxu0 %v602
    %627 = vmatprep.subr.bf16.mxu0 0
    %628 = vmatpush1.bf16.msra.mxu0 0
    %629 = vmatprep.subr.bf16.mxu0 0
    %630 = vmatpush1.bf16.msra.mxu0 0
    %631 = vmatprep.subr.bf16.mxu0 0
    %632 = vmatpush1.bf16.msra.mxu0 0
    %633 = vmatprep.subr.bf16.mxu0 0
    %634 = vmatpush1.bf16.msra.mxu0 0
    %635 = vmatprep.subr.bf16.mxu0 0
    %636 = vmatpush1.bf16.msra.mxu0 0
    %637 = vmatprep.subr.bf16.mxu0 0
    %638 = vmatpush1.bf16.msra.mxu0 0
    %639 = vmatprep.subr.bf16.mxu0 0
    %640 = vmatpush1.bf16.msra.mxu0 0
    %641 = vmatprep.subr.bf16.mxu0 0
    %642 = vmatpush1.bf16.msra.mxu0 0
    %643 = vmatprep.mubr.bf16.mxu0 0
    %644 = vmatmul.mubr.bf16.gmra.mrb[0].mxu0 %v558
    %v645 = vpop.f32.mrb[0].mxu0
    %v646 = vadd.f32 %v562, %v645
    %v647 = vpop.f32.mrb[0].mxu0
    %v648 = vpop.f32.mrb[0].mxu0
    %v649 = vpop.f32.mrb[0].mxu0
    %650 = vdwg.mxu0
    %v651 = vmax.f32 %v646, 0.0
    %s652 = scalar_lea.vmem [#allocation5], 320
    %v653 = vld [vmem:[%s652] sm:$0xf]
    %v654 = vld [vmem:[%s652 + $0x4] sm:$0xf]
    %v655 = vld [vmem:[%s652 + $0x8] sm:$0xf]
    %v656 = vld [vmem:[%s652 + $0xc] sm:$0xf]
    %v657 = vld [vmem:[%s652 + $0x10] sm:$0xf]
    %v658 = vld [vmem:[%s652 + $0x14] sm:$0xf]
    %v659 = vld [vmem:[%s652 + $0x18] sm:$0xf]
    %v660 = vld [vmem:[%s652 + $0x1c] sm:$0xf]
    %v661 = vld [vmem:[%s652 + $0x20] sm:$0xf]
    %v662 = vld [vmem:[%s652 + $0x24] sm:$0xf]
    %v663 = vld [vmem:[%s652 + $0x28] sm:$0xf]
    %v664 = vld [vmem:[%s652 + $0x2c] sm:$0xf]
    %v665 = vld [vmem:[%s652 + $0x30] sm:$0xf]
    %v666 = vld [vmem:[%s652 + $0x34] sm:$0xf]
    %v667 = vld [vmem:[%s652 + $0x38] sm:$0xf]
    %v668 = vld [vmem:[%s652 + $0x3c] sm:$0xf]
    %v669 = vld [vmem:[#allocation7 + $0x5] sm:$0x1]
    %v670 = vpack.c.bf16 %v651, %v651
    %v671 = vlaneseq
    %v672 = vshrl.u32 %v671, 7
    %v673 = vsub.s32 0, %v672
    %v674 = vrot.slane %v669, %v673
    %v691 = vunpack.c.l.b16 %v653
    %v692 = vunpack.c.l.b16 %v654
    %v693 = vunpack.c.l.b16 %v655
    %v694 = vunpack.c.l.b16 %v656
    %v695 = vunpack.c.l.b16 %v657
    %v696 = vunpack.c.l.b16 %v658
    %v697 = vunpack.c.l.b16 %v659
    %v698 = vunpack.c.l.b16 %v660
    %v699 = vunpack.c.l.b16 %v661
    %v700 = vunpack.c.l.b16 %v662
    %v701 = vunpack.c.l.b16 %v663
    %v702 = vunpack.c.l.b16 %v664
    %v703 = vunpack.c.l.b16 %v665
    %v704 = vunpack.c.l.b16 %v666
    %v705 = vunpack.c.l.b16 %v667
    %v706 = vunpack.c.l.b16 %v668
    %v707 = vpack.c.b16 %v692, %v691
    %v708 = vpack.c.b16 %v694, %v693
    %v709 = vpack.c.b16 %v696, %v695
    %v710 = vpack.c.b16 %v698, %v697
    %v711 = vpack.c.b16 %v700, %v699
    %v712 = vpack.c.b16 %v702, %v701
    %v713 = vpack.c.b16 %v704, %v703
    %v714 = vpack.c.b16 %v706, %v705
    %723 = vmatprep.subr.bf16.mxu0 0
    %724 = vmatpush1.bf16.msra.mxu0 %v707
    %725 = vmatprep.subr.bf16.mxu0 0
    %726 = vmatpush1.bf16.msra.mxu0 %v708
    %727 = vmatprep.subr.bf16.mxu0 0
    %728 = vmatpush1.bf16.msra.mxu0 %v709
    %729 = vmatprep.subr.bf16.mxu0 0
    %730 = vmatpush1.bf16.msra.mxu0 %v710
    %731 = vmatprep.subr.bf16.mxu0 0
    %732 = vmatpush1.bf16.msra.mxu0 %v711
    %733 = vmatprep.subr.bf16.mxu0 0
    %734 = vmatpush1.bf16.msra.mxu0 %v712
    %735 = vmatprep.subr.bf16.mxu0 0
    %736 = vmatpush1.bf16.msra.mxu0 %v713
    %737 = vmatprep.subr.bf16.mxu0 0
    %738 = vmatpush1.bf16.msra.mxu0 %v714
    %739 = vmatprep.subr.bf16.mxu0 0
    %740 = vmatpush1.bf16.msra.mxu0 0
    %741 = vmatprep.subr.bf16.mxu0 0
    %742 = vmatpush1.bf16.msra.mxu0 0
    %743 = vmatprep.subr.bf16.mxu0 0
    %744 = vmatpush1.bf16.msra.mxu0 0
    %745 = vmatprep.subr.bf16.mxu0 0
    %746 = vmatpush1.bf16.msra.mxu0 0
    %747 = vmatprep.subr.bf16.mxu0 0
    %748 = vmatpush1.bf16.msra.mxu0 0
    %749 = vmatprep.subr.bf16.mxu0 0
    %750 = vmatpush1.bf16.msra.mxu0 0
    %751 = vmatprep.subr.bf16.mxu0 0
    %752 = vmatpush1.bf16.msra.mxu0 0
    %753 = vmatprep.subr.bf16.mxu0 0
    %754 = vmatpush1.bf16.msra.mxu0 0
    %755 = vmatprep.mubr.bf16.mxu0 0
    %756 = vmatmul.mubr.bf16.gmra.mrb[0].mxu0 %v670
    %v757 = vpop.f32.mrb[0].mxu0
    %v758 = vadd.f32 %v674, %v757
    %v759 = vpop.f32.mrb[0].mxu0
    %v760 = vpop.f32.mrb[0].mxu0
    %v761 = vpop.f32.mrb[0].mxu0
    %762 = vdwg.mxu0
    %v763 = vxor.u32 %v758, 2147483648
    %v764 = vmul.f32 %v763, 1.442695
    %v765 = vpow.pop %v764
    %v766 = vadd.f32 %v765, 1.0
    %v767 = vrcp.pop %v766
    %v768 = vmul.f32 1.0, %v767
    %v769 = vmul.f32 %v535, %v768
    %v770 = vmul.f32 %v769, 0.1
    %v771 = vadd.f32 %v310, %v770
    %s772 = scalar_lea.vmem [#allocation5], 384
    %v773 = vld [vmem:[%s772] sm:$0xf]
    %v774 = vld [vmem:[%s772 + $0x4] sm:$0xf]
    %v775 = vld [vmem:[%s772 + $0x8] sm:$0xf]
    %v776 = vld [vmem:[%s772 + $0xc] sm:$0xf]
    %v777 = vld [vmem:[%s772 + $0x10] sm:$0xf]
    %v778 = vld [vmem:[%s772 + $0x14] sm:$0xf]
    %v779 = vld [vmem:[%s772 + $0x18] sm:$0xf]
    %v780 = vld [vmem:[%s772 + $0x1c] sm:$0xf]
    %v781 = vld [vmem:[%s772 + $0x20] sm:$0xf]
    %v782 = vld [vmem:[%s772 + $0x24] sm:$0xf]
    %v783 = vld [vmem:[%s772 + $0x28] sm:$0xf]
    %v784 = vld [vmem:[%s772 + $0x2c] sm:$0xf]
    %v785 = vld [vmem:[%s772 + $0x30] sm:$0xf]
    %v786 = vld [vmem:[%s772 + $0x34] sm:$0xf]
    %v787 = vld [vmem:[%s772 + $0x38] sm:$0xf]
    %v788 = vld [vmem:[%s772 + $0x3c] sm:$0xf]
    %v789 = vld [vmem:[#allocation7 + $0x6] sm:$0x1]
    %v790 = vpack.c.bf16 %v771, %v771
    %v791 = vlaneseq
    %v792 = vshrl.u32 %v791, 7
    %v793 = vsub.s32 0, %v792
    %v794 = vrot.slane %v789, %v793
    %v811 = vunpack.c.l.b16 %v773
    %v812 = vunpack.c.l.b16 %v774
    %v813 = vunpack.c.l.b16 %v775
    %v814 = vunpack.c.l.b16 %v776
    %v815 = vunpack.c.l.b16 %v777
    %v816 = vunpack.c.l.b16 %v778
    %v817 = vunpack.c.l.b16 %v779
    %v818 = vunpack.c.l.b16 %v780
    %v819 = vunpack.c.l.b16 %v781
    %v820 = vunpack.c.l.b16 %v782
    %v821 = vunpack.c.l.b16 %v783
    %v822 = vunpack.c.l.b16 %v784
    %v823 = vunpack.c.l.b16 %v785
    %v824 = vunpack.c.l.b16 %v786
    %v825 = vunpack.c.l.b16 %v787
    %v826 = vunpack.c.l.b16 %v788
    %v827 = vpack.c.b16 %v812, %v811
    %v828 = vpack.c.b16 %v814, %v813
    %v829 = vpack.c.b16 %v816, %v815
    %v830 = vpack.c.b16 %v818, %v817
    %v831 = vpack.c.b16 %v820, %v819
    %v832 = vpack.c.b16 %v822, %v821
    %v833 = vpack.c.b16 %v824, %v823
    %v834 = vpack.c.b16 %v826, %v825
    %843 = vmatprep.subr.bf16.mxu0 0
    %844 = vmatpush1.bf16.msra.mxu0 %v827
    %845 = vmatprep.subr.bf16.mxu0 0
    %846 = vmatpush1.bf16.msra.mxu0 %v828
    %847 = vmatprep.subr.bf16.mxu0 0
    %848 = vmatpush1.bf16.msra.mxu0 %v829
    %849 = vmatprep.subr.bf16.mxu0 0
    %850 = vmatpush1.bf16.msra.mxu0 %v830
    %851 = vmatprep.subr.bf16.mxu0 0
    %852 = vmatpush1.bf16.msra.mxu0 %v831
    %853 = vmatprep.subr.bf16.mxu0 0
    %854 = vmatpush1.bf16.msra.mxu0 %v832
    %855 = vmatprep.subr.bf16.mxu0 0
    %856 = vmatpush1.bf16.msra.mxu0 %v833
    %857 = vmatprep.subr.bf16.mxu0 0
    %858 = vmatpush1.bf16.msra.mxu0 %v834
    %859 = vmatprep.subr.bf16.mxu0 0
    %860 = vmatpush1.bf16.msra.mxu0 0
    %861 = vmatprep.subr.bf16.mxu0 0
    %862 = vmatpush1.bf16.msra.mxu0 0
    %863 = vmatprep.subr.bf16.mxu0 0
    %864 = vmatpush1.bf16.msra.mxu0 0
    %865 = vmatprep.subr.bf16.mxu0 0
    %866 = vmatpush1.bf16.msra.mxu0 0
    %867 = vmatprep.subr.bf16.mxu0 0
    %868 = vmatpush1.bf16.msra.mxu0 0
    %869 = vmatprep.subr.bf16.mxu0 0
    %870 = vmatpush1.bf16.msra.mxu0 0
    %871 = vmatprep.subr.bf16.mxu0 0
    %872 = vmatpush1.bf16.msra.mxu0 0
    %873 = vmatprep.subr.bf16.mxu0 0
    %874 = vmatpush1.bf16.msra.mxu0 0
    %875 = vmatprep.mubr.bf16.mxu0 0
    %876 = vmatmul.mubr.bf16.gmra.mrb[0].mxu0 %v790
    %v877 = vpop.f32.mrb[0].mxu0
    %v878 = vadd.f32 %v794, %v877
    %v879 = vpop.f32.mrb[0].mxu0
    %v880 = vpop.f32.mrb[0].mxu0
    %v881 = vpop.f32.mrb[0].mxu0
    %882 = vdwg.mxu0
    %v883 = vxor.u32 %v878, 2147483648
    %v884 = vmul.f32 %v883, 1.442695
    %v885 = vpow.pop %v884
    %v886 = vadd.f32 %v885, 1.0
    %v887 = vrcp.pop %v886
    %v888 = vmul.f32 1.0, %v887
    %v889 = vmul.f32 %v878, %v888
    %s890 = scalar_lea.vmem [#allocation5], 448
    %v891 = vld [vmem:[%s890] sm:$0xf]
    %v892 = vld [vmem:[%s890 + $0x4] sm:$0xf]
    %v893 = vld [vmem:[%s890 + $0x8] sm:$0xf]
    %v894 = vld [vmem:[%s890 + $0xc] sm:$0xf]
    %v895 = vld [vmem:[%s890 + $0x10] sm:$0xf]
    %v896 = vld [vmem:[%s890 + $0x14] sm:$0xf]
    %v897 = vld [vmem:[%s890 + $0x18] sm:$0xf]
    %v898 = vld [vmem:[%s890 + $0x1c] sm:$0xf]
    %v899 = vld [vmem:[%s890 + $0x20] sm:$0xf]
    %v900 = vld [vmem:[%s890 + $0x24] sm:$0xf]
    %v901 = vld [vmem:[%s890 + $0x28] sm:$0xf]
    %v902 = vld [vmem:[%s890 + $0x2c] sm:$0xf]
    %v903 = vld [vmem:[%s890 + $0x30] sm:$0xf]
    %v904 = vld [vmem:[%s890 + $0x34] sm:$0xf]
    %v905 = vld [vmem:[%s890 + $0x38] sm:$0xf]
    %v906 = vld [vmem:[%s890 + $0x3c] sm:$0xf]
    %v907 = vld [vmem:[#allocation7 + $0x7] sm:$0x1]
    %v908 = vpack.c.bf16 %v889, %v889
    %v909 = vlaneseq
    %v910 = vshrl.u32 %v909, 7
    %v911 = vsub.s32 0, %v910
    %v912 = vrot.slane %v907, %v911
    %v929 = vunpack.c.l.b16 %v891
    %v930 = vunpack.c.l.b16 %v892
    %v931 = vunpack.c.l.b16 %v893
    %v932 = vunpack.c.l.b16 %v894
    %v933 = vunpack.c.l.b16 %v895
    %v934 = vunpack.c.l.b16 %v896
    %v935 = vunpack.c.l.b16 %v897
    %v936 = vunpack.c.l.b16 %v898
    %v937 = vunpack.c.l.b16 %v899
    %v938 = vunpack.c.l.b16 %v900
    %v939 = vunpack.c.l.b16 %v901
    %v940 = vunpack.c.l.b16 %v902
    %v941 = vunpack.c.l.b16 %v903
    %v942 = vunpack.c.l.b16 %v904
    %v943 = vunpack.c.l.b16 %v905
    %v944 = vunpack.c.l.b16 %v906
    %v945 = vpack.c.b16 %v930, %v929
    %v946 = vpack.c.b16 %v932, %v931
    %v947 = vpack.c.b16 %v934, %v933
    %v948 = vpack.c.b16 %v936, %v935
    %v949 = vpack.c.b16 %v938, %v937
    %v950 = vpack.c.b16 %v940, %v939
    %v951 = vpack.c.b16 %v942, %v941
    %v952 = vpack.c.b16 %v944, %v943
    %961 = vmatprep.subr.bf16.mxu0 0
    %962 = vmatpush1.bf16.msra.mxu0 %v945
    %963 = vmatprep.subr.bf16.mxu0 0
    %964 = vmatpush1.bf16.msra.mxu0 %v946
    %965 = vmatprep.subr.bf16.mxu0 0
    %966 = vmatpush1.bf16.msra.mxu0 %v947
    %967 = vmatprep.subr.bf16.mxu0 0
    %968 = vmatpush1.bf16.msra.mxu0 %v948
    %969 = vmatprep.subr.bf16.mxu0 0
    %970 = vmatpush1.bf16.msra.mxu0 %v949
    %971 = vmatprep.subr.bf16.mxu0 0
    %972 = vmatpush1.bf16.msra.mxu0 %v950
    %973 = vmatprep.subr.bf16.mxu0 0
    %974 = vmatpush1.bf16.msra.mxu0 %v951
    %975 = vmatprep.subr.bf16.mxu0 0
    %976 = vmatpush1.bf16.msra.mxu0 %v952
    %977 = vmatprep.subr.bf16.mxu0 0
    %978 = vmatpush1.bf16.msra.mxu0 0
    %979 = vmatprep.subr.bf16.mxu0 0
    %980 = vmatpush1.bf16.msra.mxu0 0
    %981 = vmatprep.subr.bf16.mxu0 0
    %982 = vmatpush1.bf16.msra.mxu0 0
    %983 = vmatprep.subr.bf16.mxu0 0
    %984 = vmatpush1.bf16.msra.mxu0 0
    %985 = vmatprep.subr.bf16.mxu0 0
    %986 = vmatpush1.bf16.msra.mxu0 0
    %987 = vmatprep.subr.bf16.mxu0 0
    %988 = vmatpush1.bf16.msra.mxu0 0
    %989 = vmatprep.subr.bf16.mxu0 0
    %990 = vmatpush1.bf16.msra.mxu0 0
    %991 = vmatprep.subr.bf16.mxu0 0
    %992 = vmatpush1.bf16.msra.mxu0 0
    %993 = vmatprep.mubr.bf16.mxu0 0
    %994 = vmatmul.mubr.bf16.gmra.mrb[0].mxu0 %v908
    %v995 = vpop.f32.mrb[0].mxu0
    %v996 = vadd.f32 %v912, %v995
    %v997 = vpop.f32.mrb[0].mxu0
    %v998 = vpop.f32.mrb[0].mxu0
    %v999 = vpop.f32.mrb[0].mxu0
    %1000 = vdwg.mxu0
    %v1001 = vxor.u32 %v996, 2147483648
    %v1002 = vmul.f32 %v1001, 1.442695
    %v1003 = vpow.pop %v1002
    %v1004 = vadd.f32 %v1003, 1.0
    %v1005 = vrcp.pop %v1004
    %v1006 = vmul.f32 1.0, %v1005
    %v1007 = vmul.f32 %v996, %v1006
    %s1008 = scalar_lea.vmem [#allocation5], 512
    %v1009 = vld [vmem:[%s1008] sm:$0xf]
    %v1010 = vld [vmem:[%s1008 + $0x4] sm:$0xf]
    %v1011 = vld [vmem:[%s1008 + $0x8] sm:$0xf]
    %v1012 = vld [vmem:[%s1008 + $0xc] sm:$0xf]
    %v1013 = vld [vmem:[%s1008 + $0x10] sm:$0xf]
    %v1014 = vld [vmem:[%s1008 + $0x14] sm:$0xf]
    %v1015 = vld [vmem:[%s1008 + $0x18] sm:$0xf]
    %v1016 = vld [vmem:[%s1008 + $0x1c] sm:$0xf]
    %v1017 = vld [vmem:[%s1008 + $0x20] sm:$0xf]
    %v1018 = vld [vmem:[%s1008 + $0x24] sm:$0xf]
    %v1019 = vld [vmem:[%s1008 + $0x28] sm:$0xf]
    %v1020 = vld [vmem:[%s1008 + $0x2c] sm:$0xf]
    %v1021 = vld [vmem:[%s1008 + $0x30] sm:$0xf]
    %v1022 = vld [vmem:[%s1008 + $0x34] sm:$0xf]
    %v1023 = vld [vmem:[%s1008 + $0x38] sm:$0xf]
    %v1024 = vld [vmem:[%s1008 + $0x3c] sm:$0xf]
    %v1025 = vld [vmem:[#allocation7 + $0x8] sm:$0x1]
    %v1026 = vpack.c.bf16 %v1007, %v1007
    %v1027 = vlaneseq
    %v1028 = vshrl.u32 %v1027, 7
    %v1029 = vsub.s32 0, %v1028
    %v1030 = vrot.slane %v1025, %v1029
    %v1047 = vunpack.c.l.b16 %v1009
    %v1048 = vunpack.c.l.b16 %v1010
    %v1049 = vunpack.c.l.b16 %v1011
    %v1050 = vunpack.c.l.b16 %v1012
    %v1051 = vunpack.c.l.b16 %v1013
    %v1052 = vunpack.c.l.b16 %v1014
    %v1053 = vunpack.c.l.b16 %v1015
    %v1054 = vunpack.c.l.b16 %v1016
    %v1055 = vunpack.c.l.b16 %v1017
    %v1056 = vunpack.c.l.b16 %v1018
    %v1057 = vunpack.c.l.b16 %v1019
    %v1058 = vunpack.c.l.b16 %v1020
    %v1059 = vunpack.c.l.b16 %v1021
    %v1060 = vunpack.c.l.b16 %v1022
    %v1061 = vunpack.c.l.b16 %v1023
    %v1062 = vunpack.c.l.b16 %v1024
    %v1063 = vpack.c.b16 %v1048, %v1047
    %v1064 = vpack.c.b16 %v1050, %v1049
    %v1065 = vpack.c.b16 %v1052, %v1051
    %v1066 = vpack.c.b16 %v1054, %v1053
    %v1067 = vpack.c.b16 %v1056, %v1055
    %v1068 = vpack.c.b16 %v1058, %v1057
    %v1069 = vpack.c.b16 %v1060, %v1059
    %v1070 = vpack.c.b16 %v1062, %v1061
    %1079 = vmatprep.subr.bf16.mxu0 0
    %1080 = vmatpush1.bf16.msra.mxu0 %v1063
    %1081 = vmatprep.subr.bf16.mxu0 0
    %1082 = vmatpush1.bf16.msra.mxu0 %v1064
    %1083 = vmatprep.subr.bf16.mxu0 0
    %1084 = vmatpush1.bf16.msra.mxu0 %v1065
    %1085 = vmatprep.subr.bf16.mxu0 0
    %1086 = vmatpush1.bf16.msra.mxu0 %v1066
    %1087 = vmatprep.subr.bf16.mxu0 0
    %1088 = vmatpush1.bf16.msra.mxu0 %v1067
    %1089 = vmatprep.subr.bf16.mxu0 0
    %1090 = vmatpush1.bf16.msra.mxu0 %v1068
    %1091 = vmatprep.subr.bf16.mxu0 0
    %1092 = vmatpush1.bf16.msra.mxu0 %v1069
    %1093 = vmatprep.subr.bf16.mxu0 0
    %1094 = vmatpush1.bf16.msra.mxu0 %v1070
    %1095 = vmatprep.subr.bf16.mxu0 0
    %1096 = vmatpush1.bf16.msra.mxu0 0
    %1097 = vmatprep.subr.bf16.mxu0 0
    %1098 = vmatpush1.bf16.msra.mxu0 0
    %1099 = vmatprep.subr.bf16.mxu0 0
    %1100 = vmatpush1.bf16.msra.mxu0 0
    %1101 = vmatprep.subr.bf16.mxu0 0
    %1102 = vmatpush1.bf16.msra.mxu0 0
    %1103 = vmatprep.subr.bf16.mxu0 0
    %1104 = vmatpush1.bf16.msra.mxu0 0
    %1105 = vmatprep.subr.bf16.mxu0 0
    %1106 = vmatpush1.bf16.msra.mxu0 0
    %1107 = vmatprep.subr.bf16.mxu0 0
    %1108 = vmatpush1.bf16.msra.mxu0 0
    %1109 = vmatprep.subr.bf16.mxu0 0
    %1110 = vmatpush1.bf16.msra.mxu0 0
    %1111 = vmatprep.mubr.bf16.mxu0 0
    %1112 = vmatmul.mubr.bf16.gmra.mrb[0].mxu0 %v1026
    %v1113 = vpop.f32.mrb[0].mxu0
    %v1114 = vadd.f32 %v1030, %v1113
    %v1115 = vpop.f32.mrb[0].mxu0
    %v1116 = vpop.f32.mrb[0].mxu0
    %v1117 = vpop.f32.mrb[0].mxu0
    %1118 = vdwg.mxu0
    %v1119 = vxor.u32 %v1114, 2147483648
    %v1120 = vmul.f32 %v1119, 1.442695
    %v1121 = vpow.pop %v1120
    %v1122 = vadd.f32 %v1121, 1.0
    %v1123 = vrcp.pop %v1122
    %v1124 = vmul.f32 1.0, %v1123
    %v1125 = vmul.f32 %v1114, %v1124
    %s1126 = scalar_lea.vmem [#allocation5], 576
    %v1127 = vld [vmem:[%s1126] sm:$0xf]
    %v1128 = vld [vmem:[%s1126 + $0x4] sm:$0xf]
    %v1129 = vld [vmem:[%s1126 + $0x8] sm:$0xf]
    %v1130 = vld [vmem:[%s1126 + $0xc] sm:$0xf]
    %v1131 = vld [vmem:[%s1126 + $0x10] sm:$0xf]
    %v1132 = vld [vmem:[%s1126 + $0x14] sm:$0xf]
    %v1133 = vld [vmem:[%s1126 + $0x18] sm:$0xf]
    %v1134 = vld [vmem:[%s1126 + $0x1c] sm:$0xf]
    %v1135 = vld [vmem:[%s1126 + $0x20] sm:$0xf]
    %v1136 = vld [vmem:[%s1126 + $0x24] sm:$0xf]
    %v1137 = vld [vmem:[%s1126 + $0x28] sm:$0xf]
    %v1138 = vld [vmem:[%s1126 + $0x2c] sm:$0xf]
    %v1139 = vld [vmem:[%s1126 + $0x30] sm:$0xf]
    %v1140 = vld [vmem:[%s1126 + $0x34] sm:$0xf]
    %v1141 = vld [vmem:[%s1126 + $0x38] sm:$0xf]
    %v1142 = vld [vmem:[%s1126 + $0x3c] sm:$0xf]
    %v1143 = vld [vmem:[#allocation7 + $0x9] sm:$0x1]
    %v1144 = vpack.c.bf16 %v1125, %v1125
    %v1145 = vlaneseq
    %v1146 = vshrl.u32 %v1145, 7
    %v1147 = vsub.s32 0, %v1146
    %v1148 = vrot.slane %v1143, %v1147
    %v1165 = vunpack.c.l.b16 %v1127
    %v1166 = vunpack.c.l.b16 %v1128
    %v1167 = vunpack.c.l.b16 %v1129
    %v1168 = vunpack.c.l.b16 %v1130
    %v1169 = vunpack.c.l.b16 %v1131
    %v1170 = vunpack.c.l.b16 %v1132
    %v1171 = vunpack.c.l.b16 %v1133
    %v1172 = vunpack.c.l.b16 %v1134
    %v1173 = vunpack.c.l.b16 %v1135
    %v1174 = vunpack.c.l.b16 %v1136
    %v1175 = vunpack.c.l.b16 %v1137
    %v1176 = vunpack.c.l.b16 %v1138
    %v1177 = vunpack.c.l.b16 %v1139
    %v1178 = vunpack.c.l.b16 %v1140
    %v1179 = vunpack.c.l.b16 %v1141
    %v1180 = vunpack.c.l.b16 %v1142
    %v1181 = vpack.c.b16 %v1166, %v1165
    %v1182 = vpack.c.b16 %v1168, %v1167
    %v1183 = vpack.c.b16 %v1170, %v1169
    %v1184 = vpack.c.b16 %v1172, %v1171
    %v1185 = vpack.c.b16 %v1174, %v1173
    %v1186 = vpack.c.b16 %v1176, %v1175
    %v1187 = vpack.c.b16 %v1178, %v1177
    %v1188 = vpack.c.b16 %v1180, %v1179
    %1197 = vmatprep.subr.bf16.mxu0 0
    %1198 = vmatpush1.bf16.msra.mxu0 %v1181
    %1199 = vmatprep.subr.bf16.mxu0 0
    %1200 = vmatpush1.bf16.msra.mxu0 %v1182
    %1201 = vmatprep.subr.bf16.mxu0 0
    %1202 = vmatpush1.bf16.msra.mxu0 %v1183
    %1203 = vmatprep.subr.bf16.mxu0 0
    %1204 = vmatpush1.bf16.msra.mxu0 %v1184
    %1205 = vmatprep.subr.bf16.mxu0 0
    %1206 = vmatpush1.bf16.msra.mxu0 %v1185
    %1207 = vmatprep.subr.bf16.mxu0 0
    %1208 = vmatpush1.bf16.msra.mxu0 %v1186
    %1209 = vmatprep.subr.bf16.mxu0 0
    %1210 = vmatpush1.bf16.msra.mxu0 %v1187
    %1211 = vmatprep.subr.bf16.mxu0 0
    %1212 = vmatpush1.bf16.msra.mxu0 %v1188
    %1213 = vmatprep.subr.bf16.mxu0 0
    %1214 = vmatpush1.bf16.msra.mxu0 0
    %1215 = vmatprep.subr.bf16.mxu0 0
    %1216 = vmatpush1.bf16.msra.mxu0 0
    %1217 = vmatprep.subr.bf16.mxu0 0
    %1218 = vmatpush1.bf16.msra.mxu0 0
    %1219 = vmatprep.subr.bf16.mxu0 0
    %1220 = vmatpush1.bf16.msra.mxu0 0
    %1221 = vmatprep.subr.bf16.mxu0 0
    %1222 = vmatpush1.bf16.msra.mxu0 0
    %1223 = vmatprep.subr.bf16.mxu0 0
    %1224 = vmatpush1.bf16.msra.mxu0 0
    %1225 = vmatprep.subr.bf16.mxu0 0
    %1226 = vmatpush1.bf16.msra.mxu0 0
    %1227 = vmatprep.subr.bf16.mxu0 0
    %1228 = vmatpush1.bf16.msra.mxu0 0
    %1229 = vmatprep.mubr.bf16.mxu0 0
    %1230 = vmatmul.mubr.bf16.gmra.mrb[0].mxu0 %v1144
    %v1231 = vpop.f32.mrb[0].mxu0
    %v1232 = vadd.f32 %v1148, %v1231
    %v1233 = vpop.f32.mrb[0].mxu0
    %v1234 = vpop.f32.mrb[0].mxu0
    %v1235 = vpop.f32.mrb[0].mxu0
    %1236 = vdwg.mxu0
    %s1237 = scalar_lea.vmem [#allocation5], 640
    %v1238 = vld [vmem:[%s1237] sm:$0xf]
    %v1239 = vld [vmem:[%s1237 + $0x4] sm:$0xf]
    %v1240 = vld [vmem:[%s1237 + $0x8] sm:$0xf]
    %v1241 = vld [vmem:[%s1237 + $0xc] sm:$0xf]
    %v1242 = vld [vmem:[%s1237 + $0x10] sm:$0xf]
    %v1243 = vld [vmem:[%s1237 + $0x14] sm:$0xf]
    %v1244 = vld [vmem:[%s1237 + $0x18] sm:$0xf]
    %v1245 = vld [vmem:[%s1237 + $0x1c] sm:$0xf]
    %v1246 = vld [vmem:[%s1237 + $0x20] sm:$0xf]
    %v1247 = vld [vmem:[%s1237 + $0x24] sm:$0xf]
    %v1248 = vld [vmem:[%s1237 + $0x28] sm:$0xf]
    %v1249 = vld [vmem:[%s1237 + $0x2c] sm:$0xf]
    %v1250 = vld [vmem:[%s1237 + $0x30] sm:$0xf]
    %v1251 = vld [vmem:[%s1237 + $0x34] sm:$0xf]
    %v1252 = vld [vmem:[%s1237 + $0x38] sm:$0xf]
    %v1253 = vld [vmem:[%s1237 + $0x3c] sm:$0xf]
    %v1254 = vld [vmem:[#allocation7 + $0xa] sm:$0x1]
    %v1255 = vpack.c.bf16 %v1232, %v1232
    %v1256 = vlaneseq
    %v1257 = vshrl.u32 %v1256, 7
    %v1258 = vsub.s32 0, %v1257
    %v1259 = vrot.slane %v1254, %v1258
    %v1276 = vunpack.c.l.b16 %v1238
    %v1277 = vunpack.c.l.b16 %v1239
    %v1278 = vunpack.c.l.b16 %v1240
    %v1279 = vunpack.c.l.b16 %v1241
    %v1280 = vunpack.c.l.b16 %v1242
    %v1281 = vunpack.c.l.b16 %v1243
    %v1282 = vunpack.c.l.b16 %v1244
    %v1283 = vunpack.c.l.b16 %v1245
    %v1284 = vunpack.c.l.b16 %v1246
    %v1285 = vunpack.c.l.b16 %v1247
    %v1286 = vunpack.c.l.b16 %v1248
    %v1287 = vunpack.c.l.b16 %v1249
    %v1288 = vunpack.c.l.b16 %v1250
    %v1289 = vunpack.c.l.b16 %v1251
    %v1290 = vunpack.c.l.b16 %v1252
    %v1291 = vunpack.c.l.b16 %v1253
    %v1292 = vpack.c.b16 %v1277, %v1276
    %v1293 = vpack.c.b16 %v1279, %v1278
    %v1294 = vpack.c.b16 %v1281, %v1280
    %v1295 = vpack.c.b16 %v1283, %v1282
    %v1296 = vpack.c.b16 %v1285, %v1284
    %v1297 = vpack.c.b16 %v1287, %v1286
    %v1298 = vpack.c.b16 %v1289, %v1288
    %v1299 = vpack.c.b16 %v1291, %v1290
    %1308 = vmatprep.subr.bf16.mxu0 0
    %1309 = vmatpush1.bf16.msra.mxu0 %v1292
    %1310 = vmatprep.subr.bf16.mxu0 0
    %1311 = vmatpush1.bf16.msra.mxu0 %v1293
    %1312 = vmatprep.subr.bf16.mxu0 0
    %1313 = vmatpush1.bf16.msra.mxu0 %v1294
    %1314 = vmatprep.subr.bf16.mxu0 0
    %1315 = vmatpush1.bf16.msra.mxu0 %v1295
    %1316 = vmatprep.subr.bf16.mxu0 0
    %1317 = vmatpush1.bf16.msra.mxu0 %v1296
    %1318 = vmatprep.subr.bf16.mxu0 0
    %1319 = vmatpush1.bf16.msra.mxu0 %v1297
    %1320 = vmatprep.subr.bf16.mxu0 0
    %1321 = vmatpush1.bf16.msra.mxu0 %v1298
    %1322 = vmatprep.subr.bf16.mxu0 0
    %1323 = vmatpush1.bf16.msra.mxu0 %v1299
    %1324 = vmatprep.subr.bf16.mxu0 0
    %1325 = vmatpush1.bf16.msra.mxu0 0
    %1326 = vmatprep.subr.bf16.mxu0 0
    %1327 = vmatpush1.bf16.msra.mxu0 0
    %1328 = vmatprep.subr.bf16.mxu0 0
    %1329 = vmatpush1.bf16.msra.mxu0 0
    %1330 = vmatprep.subr.bf16.mxu0 0
    %1331 = vmatpush1.bf16.msra.mxu0 0
    %1332 = vmatprep.subr.bf16.mxu0 0
    %1333 = vmatpush1.bf16.msra.mxu0 0
    %1334 = vmatprep.subr.bf16.mxu0 0
    %1335 = vmatpush1.bf16.msra.mxu0 0
    %1336 = vmatprep.subr.bf16.mxu0 0
    %1337 = vmatpush1.bf16.msra.mxu0 0
    %1338 = vmatprep.subr.bf16.mxu0 0
    %1339 = vmatpush1.bf16.msra.mxu0 0
    %1340 = vmatprep.mubr.bf16.mxu0 0
    %1341 = vmatmul.mubr.bf16.gmra.mrb[0].mxu0 %v1255
    %v1342 = vpop.f32.mrb[0].mxu0
    %v1343 = vadd.f32 %v1259, %v1342
    %v1344 = vpop.f32.mrb[0].mxu0
    %v1345 = vpop.f32.mrb[0].mxu0
    %v1346 = vpop.f32.mrb[0].mxu0
    %1347 = vdwg.mxu0
    %v1348 = vmax.f32 %v1343, 0.0
    %s1349 = scalar_lea.vmem [#allocation5], 704
    %v1350 = vld [vmem:[%s1349] sm:$0xf]
    %v1351 = vld [vmem:[%s1349 + $0x4] sm:$0xf]
    %v1352 = vld [vmem:[%s1349 + $0x8] sm:$0xf]
    %v1353 = vld [vmem:[%s1349 + $0xc] sm:$0xf]
    %v1354 = vld [vmem:[%s1349 + $0x10] sm:$0xf]
    %v1355 = vld [vmem:[%s1349 + $0x14] sm:$0xf]
    %v1356 = vld [vmem:[%s1349 + $0x18] sm:$0xf]
    %v1357 = vld [vmem:[%s1349 + $0x1c] sm:$0xf]
    %v1358 = vld [vmem:[%s1349 + $0x20] sm:$0xf]
    %v1359 = vld [vmem:[%s1349 + $0x24] sm:$0xf]
    %v1360 = vld [vmem:[%s1349 + $0x28] sm:$0xf]
    %v1361 = vld [vmem:[%s1349 + $0x2c] sm:$0xf]
    %v1362 = vld [vmem:[%s1349 + $0x30] sm:$0xf]
    %v1363 = vld [vmem:[%s1349 + $0x34] sm:$0xf]
    %v1364 = vld [vmem:[%s1349 + $0x38] sm:$0xf]
    %v1365 = vld [vmem:[%s1349 + $0x3c] sm:$0xf]
    %v1366 = vld [vmem:[#allocation7 + $0xb] sm:$0x1]
    %v1367 = vpack.c.bf16 %v1348, %v1348
    %v1368 = vlaneseq
    %v1369 = vshrl.u32 %v1368, 7
    %v1370 = vsub.s32 0, %v1369
    %v1371 = vrot.slane %v1366, %v1370
    %v1388 = vunpack.c.l.b16 %v1350
    %v1389 = vunpack.c.l.b16 %v1351
    %v1390 = vunpack.c.l.b16 %v1352
    %v1391 = vunpack.c.l.b16 %v1353
    %v1392 = vunpack.c.l.b16 %v1354
    %v1393 = vunpack.c.l.b16 %v1355
    %v1394 = vunpack.c.l.b16 %v1356
    %v1395 = vunpack.c.l.b16 %v1357
    %v1396 = vunpack.c.l.b16 %v1358
    %v1397 = vunpack.c.l.b16 %v1359
    %v1398 = vunpack.c.l.b16 %v1360
    %v1399 = vunpack.c.l.b16 %v1361
    %v1400 = vunpack.c.l.b16 %v1362
    %v1401 = vunpack.c.l.b16 %v1363
    %v1402 = vunpack.c.l.b16 %v1364
    %v1403 = vunpack.c.l.b16 %v1365
    %v1404 = vpack.c.b16 %v1389, %v1388
    %v1405 = vpack.c.b16 %v1391, %v1390
    %v1406 = vpack.c.b16 %v1393, %v1392
    %v1407 = vpack.c.b16 %v1395, %v1394
    %v1408 = vpack.c.b16 %v1397, %v1396
    %v1409 = vpack.c.b16 %v1399, %v1398
    %v1410 = vpack.c.b16 %v1401, %v1400
    %v1411 = vpack.c.b16 %v1403, %v1402
    %1420 = vmatprep.subr.bf16.mxu0 0
    %1421 = vmatpush1.bf16.msra.mxu0 %v1404
    %1422 = vmatprep.subr.bf16.mxu0 0
    %1423 = vmatpush1.bf16.msra.mxu0 %v1405
    %1424 = vmatprep.subr.bf16.mxu0 0
    %1425 = vmatpush1.bf16.msra.mxu0 %v1406
    %1426 = vmatprep.subr.bf16.mxu0 0
    %1427 = vmatpush1.bf16.msra.mxu0 %v1407
    %1428 = vmatprep.subr.bf16.mxu0 0
    %1429 = vmatpush1.bf16.msra.mxu0 %v1408
    %1430 = vmatprep.subr.bf16.mxu0 0
    %1431 = vmatpush1.bf16.msra.mxu0 %v1409
    %1432 = vmatprep.subr.bf16.mxu0 0
    %1433 = vmatpush1.bf16.msra.mxu0 %v1410
    %1434 = vmatprep.subr.bf16.mxu0 0
    %1435 = vmatpush1.bf16.msra.mxu0 %v1411
    %1436 = vmatprep.subr.bf16.mxu0 0
    %1437 = vmatpush1.bf16.msra.mxu0 0
    %1438 = vmatprep.subr.bf16.mxu0 0
    %1439 = vmatpush1.bf16.msra.mxu0 0
    %1440 = vmatprep.subr.bf16.mxu0 0
    %1441 = vmatpush1.bf16.msra.mxu0 0
    %1442 = vmatprep.subr.bf16.mxu0 0
    %1443 = vmatpush1.bf16.msra.mxu0 0
    %1444 = vmatprep.subr.bf16.mxu0 0
    %1445 = vmatpush1.bf16.msra.mxu0 0
    %1446 = vmatprep.subr.bf16.mxu0 0
    %1447 = vmatpush1.bf16.msra.mxu0 0
    %1448 = vmatprep.subr.bf16.mxu0 0
    %1449 = vmatpush1.bf16.msra.mxu0 0
    %1450 = vmatprep.subr.bf16.mxu0 0
    %1451 = vmatpush1.bf16.msra.mxu0 0
    %1452 = vmatprep.mubr.bf16.mxu0 0
    %1453 = vmatmul.mubr.bf16.gmra.mrb[0].mxu0 %v1367
    %v1454 = vpop.f32.mrb[0].mxu0
    %v1455 = vadd.f32 %v1371, %v1454
    %v1456 = vpop.f32.mrb[0].mxu0
    %v1457 = vpop.f32.mrb[0].mxu0
    %v1458 = vpop.f32.mrb[0].mxu0
    %1459 = vdwg.mxu0
    %v1460 = vxor.u32 %v1455, 2147483648
    %v1461 = vmul.f32 %v1460, 1.442695
    %v1462 = vpow.pop %v1461
    %v1463 = vadd.f32 %v1462, 1.0
    %v1464 = vrcp.pop %v1463
    %v1465 = vmul.f32 1.0, %v1464
    %v1466 = vmul.f32 %v1232, %v1465
    %v1467 = vmul.f32 %v1466, 0.1
    %v1468 = vadd.f32 %v1007, %v1467
    %s1469 = scalar_lea.vmem [#allocation5], 768
    %v1470 = vld [vmem:[%s1469] sm:$0xf]
    %v1471 = vld [vmem:[%s1469 + $0x4] sm:$0xf]
    %v1472 = vld [vmem:[%s1469 + $0x8] sm:$0xf]
    %v1473 = vld [vmem:[%s1469 + $0xc] sm:$0xf]
    %v1474 = vld [vmem:[%s1469 + $0x10] sm:$0xf]
    %v1475 = vld [vmem:[%s1469 + $0x14] sm:$0xf]
    %v1476 = vld [vmem:[%s1469 + $0x18] sm:$0xf]
    %v1477 = vld [vmem:[%s1469 + $0x1c] sm:$0xf]
    %v1478 = vld [vmem:[%s1469 + $0x20] sm:$0xf]
    %v1479 = vld [vmem:[%s1469 + $0x24] sm:$0xf]
    %v1480 = vld [vmem:[%s1469 + $0x28] sm:$0xf]
    %v1481 = vld [vmem:[%s1469 + $0x2c] sm:$0xf]
    %v1482 = vld [vmem:[%s1469 + $0x30] sm:$0xf]
    %v1483 = vld [vmem:[%s1469 + $0x34] sm:$0xf]
    %v1484 = vld [vmem:[%s1469 + $0x38] sm:$0xf]
    %v1485 = vld [vmem:[%s1469 + $0x3c] sm:$0xf]
    %v1486 = vld [vmem:[#allocation7 + $0xc] sm:$0x1]
    %v1487 = vpack.c.bf16 %v1468, %v1468
    %v1488 = vlaneseq
    %v1489 = vshrl.u32 %v1488, 7
    %v1490 = vsub.s32 0, %v1489
    %v1491 = vrot.slane %v1486, %v1490
    %v1508 = vunpack.c.l.b16 %v1470
    %v1509 = vunpack.c.l.b16 %v1471
    %v1510 = vunpack.c.l.b16 %v1472
    %v1511 = vunpack.c.l.b16 %v1473
    %v1512 = vunpack.c.l.b16 %v1474
    %v1513 = vunpack.c.l.b16 %v1475
    %v1514 = vunpack.c.l.b16 %v1476
    %v1515 = vunpack.c.l.b16 %v1477
    %v1516 = vunpack.c.l.b16 %v1478
    %v1517 = vunpack.c.l.b16 %v1479
    %v1518 = vunpack.c.l.b16 %v1480
    %v1519 = vunpack.c.l.b16 %v1481
    %v1520 = vunpack.c.l.b16 %v1482
    %v1521 = vunpack.c.l.b16 %v1483
    %v1522 = vunpack.c.l.b16 %v1484
    %v1523 = vunpack.c.l.b16 %v1485
    %v1524 = vpack.c.b16 %v1509, %v1508
    %v1525 = vpack.c.b16 %v1511, %v1510
    %v1526 = vpack.c.b16 %v1513, %v1512
    %v1527 = vpack.c.b16 %v1515, %v1514
    %v1528 = vpack.c.b16 %v1517, %v1516
    %v1529 = vpack.c.b16 %v1519, %v1518
    %v1530 = vpack.c.b16 %v1521, %v1520
    %v1531 = vpack.c.b16 %v1523, %v1522
    %1540 = vmatprep.subr.bf16.mxu0 0
    %1541 = vmatpush1.bf16.msra.mxu0 %v1524
    %1542 = vmatprep.subr.bf16.mxu0 0
    %1543 = vmatpush1.bf16.msra.mxu0 %v1525
    %1544 = vmatprep.subr.bf16.mxu0 0
    %1545 = vmatpush1.bf16.msra.mxu0 %v1526
    %1546 = vmatprep.subr.bf16.mxu0 0
    %1547 = vmatpush1.bf16.msra.mxu0 %v1527
    %1548 = vmatprep.subr.bf16.mxu0 0
    %1549 = vmatpush1.bf16.msra.mxu0 %v1528
    %1550 = vmatprep.subr.bf16.mxu0 0
    %1551 = vmatpush1.bf16.msra.mxu0 %v1529
    %1552 = vmatprep.subr.bf16.mxu0 0
    %1553 = vmatpush1.bf16.msra.mxu0 %v1530
    %1554 = vmatprep.subr.bf16.mxu0 0
    %1555 = vmatpush1.bf16.msra.mxu0 %v1531
    %1556 = vmatprep.subr.bf16.mxu0 0
    %1557 = vmatpush1.bf16.msra.mxu0 0
    %1558 = vmatprep.subr.bf16.mxu0 0
    %1559 = vmatpush1.bf16.msra.mxu0 0
    %1560 = vmatprep.subr.bf16.mxu0 0
    %1561 = vmatpush1.bf16.msra.mxu0 0
    %1562 = vmatprep.subr.bf16.mxu0 0
    %1563 = vmatpush1.bf16.msra.mxu0 0
    %1564 = vmatprep.subr.bf16.mxu0 0
    %1565 = vmatpush1.bf16.msra.mxu0 0
    %1566 = vmatprep.subr.bf16.mxu0 0
    %1567 = vmatpush1.bf16.msra.mxu0 0
    %1568 = vmatprep.subr.bf16.mxu0 0
    %1569 = vmatpush1.bf16.msra.mxu0 0
    %1570 = vmatprep.subr.bf16.mxu0 0
    %1571 = vmatpush1.bf16.msra.mxu0 0
    %1572 = vmatprep.mubr.bf16.mxu0 0
    %1573 = vmatmul.mubr.bf16.gmra.mrb[0].mxu0 %v1487
    %v1574 = vpop.f32.mrb[0].mxu0
    %v1575 = vadd.f32 %v1491, %v1574
    %v1576 = vpop.f32.mrb[0].mxu0
    %v1577 = vpop.f32.mrb[0].mxu0
    %v1578 = vpop.f32.mrb[0].mxu0
    %1579 = vdwg.mxu0
    %v1580 = vxor.u32 %v1575, 2147483648
    %v1581 = vmul.f32 %v1580, 1.442695
    %v1582 = vpow.pop %v1581
    %v1583 = vadd.f32 %v1582, 1.0
    %v1584 = vrcp.pop %v1583
    %v1585 = vmul.f32 1.0, %v1584
    %v1586 = vmul.f32 %v1575, %v1585
    %s1587 = scalar_lea.vmem [#allocation5], 832
    %v1588 = vld [vmem:[%s1587] sm:$0xf]
    %v1589 = vld [vmem:[%s1587 + $0x4] sm:$0xf]
    %v1590 = vld [vmem:[%s1587 + $0x8] sm:$0xf]
    %v1591 = vld [vmem:[%s1587 + $0xc] sm:$0xf]
    %v1592 = vld [vmem:[%s1587 + $0x10] sm:$0xf]
    %v1593 = vld [vmem:[%s1587 + $0x14] sm:$0xf]
    %v1594 = vld [vmem:[%s1587 + $0x18] sm:$0xf]
    %v1595 = vld [vmem:[%s1587 + $0x1c] sm:$0xf]
    %v1596 = vld [vmem:[%s1587 + $0x20] sm:$0xf]
    %v1597 = vld [vmem:[%s1587 + $0x24] sm:$0xf]
    %v1598 = vld [vmem:[%s1587 + $0x28] sm:$0xf]
    %v1599 = vld [vmem:[%s1587 + $0x2c] sm:$0xf]
    %v1600 = vld [vmem:[%s1587 + $0x30] sm:$0xf]
    %v1601 = vld [vmem:[%s1587 + $0x34] sm:$0xf]
    %v1602 = vld [vmem:[%s1587 + $0x38] sm:$0xf]
    %v1603 = vld [vmem:[%s1587 + $0x3c] sm:$0xf]
    %v1604 = vld [vmem:[#allocation7 + $0xd] sm:$0x1]
    %v1605 = vpack.c.bf16 %v1586, %v1586
    %v1606 = vlaneseq
    %v1607 = vshrl.u32 %v1606, 7
    %v1608 = vsub.s32 0, %v1607
    %v1609 = vrot.slane %v1604, %v1608
    %v1626 = vunpack.c.l.b16 %v1588
    %v1627 = vunpack.c.l.b16 %v1589
    %v1628 = vunpack.c.l.b16 %v1590
    %v1629 = vunpack.c.l.b16 %v1591
    %v1630 = vunpack.c.l.b16 %v1592
    %v1631 = vunpack.c.l.b16 %v1593
    %v1632 = vunpack.c.l.b16 %v1594
    %v1633 = vunpack.c.l.b16 %v1595
    %v1634 = vunpack.c.l.b16 %v1596
    %v1635 = vunpack.c.l.b16 %v1597
    %v1636 = vunpack.c.l.b16 %v1598
    %v1637 = vunpack.c.l.b16 %v1599
    %v1638 = vunpack.c.l.b16 %v1600
    %v1639 = vunpack.c.l.b16 %v1601
    %v1640 = vunpack.c.l.b16 %v1602
    %v1641 = vunpack.c.l.b16 %v1603
    %v1642 = vpack.c.b16 %v1627, %v1626
    %v1643 = vpack.c.b16 %v1629, %v1628
    %v1644 = vpack.c.b16 %v1631, %v1630
    %v1645 = vpack.c.b16 %v1633, %v1632
    %v1646 = vpack.c.b16 %v1635, %v1634
    %v1647 = vpack.c.b16 %v1637, %v1636
    %v1648 = vpack.c.b16 %v1639, %v1638
    %v1649 = vpack.c.b16 %v1641, %v1640
    %1658 = vmatprep.subr.bf16.mxu0 0
    %1659 = vmatpush1.bf16.msra.mxu0 %v1642
    %1660 = vmatprep.subr.bf16.mxu0 0
    %1661 = vmatpush1.bf16.msra.mxu0 %v1643
    %1662 = vmatprep.subr.bf16.mxu0 0
    %1663 = vmatpush1.bf16.msra.mxu0 %v1644
    %1664 = vmatprep.subr.bf16.mxu0 0
    %1665 = vmatpush1.bf16.msra.mxu0 %v1645
    %1666 = vmatprep.subr.bf16.mxu0 0
    %1667 = vmatpush1.bf16.msra.mxu0 %v1646
    %1668 = vmatprep.subr.bf16.mxu0 0
    %1669 = vmatpush1.bf16.msra.mxu0 %v1647
    %1670 = vmatprep.subr.bf16.mxu0 0
    %1671 = vmatpush1.bf16.msra.mxu0 %v1648
    %1672 = vmatprep.subr.bf16.mxu0 0
    %1673 = vmatpush1.bf16.msra.mxu0 %v1649
    %1674 = vmatprep.subr.bf16.mxu0 0
    %1675 = vmatpush1.bf16.msra.mxu0 0
    %1676 = vmatprep.subr.bf16.mxu0 0
    %1677 = vmatpush1.bf16.msra.mxu0 0
    %1678 = vmatprep.subr.bf16.mxu0 0
    %1679 = vmatpush1.bf16.msra.mxu0 0
    %1680 = vmatprep.subr.bf16.mxu0 0
    %1681 = vmatpush1.bf16.msra.mxu0 0
    %1682 = vmatprep.subr.bf16.mxu0 0
    %1683 = vmatpush1.bf16.msra.mxu0 0
    %1684 = vmatprep.subr.bf16.mxu0 0
    %1685 = vmatpush1.bf16.msra.mxu0 0
    %1686 = vmatprep.subr.bf16.mxu0 0
    %1687 = vmatpush1.bf16.msra.mxu0 0
    %1688 = vmatprep.subr.bf16.mxu0 0
    %1689 = vmatpush1.bf16.msra.mxu0 0
    %1690 = vmatprep.mubr.bf16.mxu0 0
    %1691 = vmatmul.mubr.bf16.gmra.mrb[0].mxu0 %v1605
    %v1692 = vpop.f32.mrb[0].mxu0
    %v1693 = vadd.f32 %v1609, %v1692
    %v1694 = vpop.f32.mrb[0].mxu0
    %v1695 = vpop.f32.mrb[0].mxu0
    %v1696 = vpop.f32.mrb[0].mxu0
    %1697 = vdwg.mxu0
    %v1698 = vxor.u32 %v1693, 2147483648
    %v1699 = vmul.f32 %v1698, 1.442695
    %v1700 = vpow.pop %v1699
    %v1701 = vadd.f32 %v1700, 1.0
    %v1702 = vrcp.pop %v1701
    %v1703 = vmul.f32 1.0, %v1702
    %v1704 = vmul.f32 %v1693, %v1703
    %s1705 = scalar_lea.vmem [#allocation5], 896
    %v1706 = vld [vmem:[%s1705] sm:$0xf]
    %v1707 = vld [vmem:[%s1705 + $0x4] sm:$0xf]
    %v1708 = vld [vmem:[%s1705 + $0x8] sm:$0xf]
    %v1709 = vld [vmem:[%s1705 + $0xc] sm:$0xf]
    %v1710 = vld [vmem:[%s1705 + $0x10] sm:$0xf]
    %v1711 = vld [vmem:[%s1705 + $0x14] sm:$0xf]
    %v1712 = vld [vmem:[%s1705 + $0x18] sm:$0xf]
    %v1713 = vld [vmem:[%s1705 + $0x1c] sm:$0xf]
    %v1714 = vld [vmem:[%s1705 + $0x20] sm:$0xf]
    %v1715 = vld [vmem:[%s1705 + $0x24] sm:$0xf]
    %v1716 = vld [vmem:[%s1705 + $0x28] sm:$0xf]
    %v1717 = vld [vmem:[%s1705 + $0x2c] sm:$0xf]
    %v1718 = vld [vmem:[%s1705 + $0x30] sm:$0xf]
    %v1719 = vld [vmem:[%s1705 + $0x34] sm:$0xf]
    %v1720 = vld [vmem:[%s1705 + $0x38] sm:$0xf]
    %v1721 = vld [vmem:[%s1705 + $0x3c] sm:$0xf]
    %v1722 = vld [vmem:[#allocation7 + $0xe] sm:$0x1]
    %v1723 = vpack.c.bf16 %v1704, %v1704
    %v1724 = vlaneseq
    %v1725 = vshrl.u32 %v1724, 7
    %v1726 = vsub.s32 0, %v1725
    %v1727 = vrot.slane %v1722, %v1726
    %v1744 = vunpack.c.l.b16 %v1706
    %v1745 = vunpack.c.l.b16 %v1707
    %v1746 = vunpack.c.l.b16 %v1708
    %v1747 = vunpack.c.l.b16 %v1709
    %v1748 = vunpack.c.l.b16 %v1710
    %v1749 = vunpack.c.l.b16 %v1711
    %v1750 = vunpack.c.l.b16 %v1712
    %v1751 = vunpack.c.l.b16 %v1713
    %v1752 = vunpack.c.l.b16 %v1714
    %v1753 = vunpack.c.l.b16 %v1715
    %v1754 = vunpack.c.l.b16 %v1716
    %v1755 = vunpack.c.l.b16 %v1717
    %v1756 = vunpack.c.l.b16 %v1718
    %v1757 = vunpack.c.l.b16 %v1719
    %v1758 = vunpack.c.l.b16 %v1720
    %v1759 = vunpack.c.l.b16 %v1721
    %v1760 = vpack.c.b16 %v1745, %v1744
    %v1761 = vpack.c.b16 %v1747, %v1746
    %v1762 = vpack.c.b16 %v1749, %v1748
    %v1763 = vpack.c.b16 %v1751, %v1750
    %v1764 = vpack.c.b16 %v1753, %v1752
    %v1765 = vpack.c.b16 %v1755, %v1754
    %v1766 = vpack.c.b16 %v1757, %v1756
    %v1767 = vpack.c.b16 %v1759, %v1758
    %1776 = vmatprep.subr.bf16.mxu0 0
    %1777 = vmatpush1.bf16.msra.mxu0 %v1760
    %1778 = vmatprep.subr.bf16.mxu0 0
    %1779 = vmatpush1.bf16.msra.mxu0 %v1761
    %1780 = vmatprep.subr.bf16.mxu0 0
    %1781 = vmatpush1.bf16.msra.mxu0 %v1762
    %1782 = vmatprep.subr.bf16.mxu0 0
    %1783 = vmatpush1.bf16.msra.mxu0 %v1763
    %1784 = vmatprep.subr.bf16.mxu0 0
    %1785 = vmatpush1.bf16.msra.mxu0 %v1764
    %1786 = vmatprep.subr.bf16.mxu0 0
    %1787 = vmatpush1.bf16.msra.mxu0 %v1765
    %1788 = vmatprep.subr.bf16.mxu0 0
    %1789 = vmatpush1.bf16.msra.mxu0 %v1766
    %1790 = vmatprep.subr.bf16.mxu0 0
    %1791 = vmatpush1.bf16.msra.mxu0 %v1767
    %1792 = vmatprep.subr.bf16.mxu0 0
    %1793 = vmatpush1.bf16.msra.mxu0 0
    %1794 = vmatprep.subr.bf16.mxu0 0
    %1795 = vmatpush1.bf16.msra.mxu0 0
    %1796 = vmatprep.subr.bf16.mxu0 0
    %1797 = vmatpush1.bf16.msra.mxu0 0
    %1798 = vmatprep.subr.bf16.mxu0 0
    %1799 = vmatpush1.bf16.msra.mxu0 0
    %1800 = vmatprep.subr.bf16.mxu0 0
    %1801 = vmatpush1.bf16.msra.mxu0 0
    %1802 = vmatprep.subr.bf16.mxu0 0
    %1803 = vmatpush1.bf16.msra.mxu0 0
    %1804 = vmatprep.subr.bf16.mxu0 0
    %1805 = vmatpush1.bf16.msra.mxu0 0
    %1806 = vmatprep.subr.bf16.mxu0 0
    %1807 = vmatpush1.bf16.msra.mxu0 0
    %1808 = vmatprep.mubr.bf16.mxu0 0
    %1809 = vmatmul.mubr.bf16.gmra.mrb[0].mxu0 %v1723
    %v1810 = vpop.f32.mrb[0].mxu0
    %v1811 = vadd.f32 %v1727, %v1810
    %v1812 = vpop.f32.mrb[0].mxu0
    %v1813 = vpop.f32.mrb[0].mxu0
    %v1814 = vpop.f32.mrb[0].mxu0
    %1815 = vdwg.mxu0
    %v1816 = vxor.u32 %v1811, 2147483648
    %v1817 = vmul.f32 %v1816, 1.442695
    %v1818 = vpow.pop %v1817
    %v1819 = vadd.f32 %v1818, 1.0
    %v1820 = vrcp.pop %v1819
    %v1821 = vmul.f32 1.0, %v1820
    %v1822 = vmul.f32 %v1811, %v1821
    %s1823 = scalar_lea.vmem [#allocation5], 960
    %v1824 = vld [vmem:[%s1823] sm:$0xf]
    %v1825 = vld [vmem:[%s1823 + $0x4] sm:$0xf]
    %v1826 = vld [vmem:[%s1823 + $0x8] sm:$0xf]
    %v1827 = vld [vmem:[%s1823 + $0xc] sm:$0xf]
    %v1828 = vld [vmem:[%s1823 + $0x10] sm:$0xf]
    %v1829 = vld [vmem:[%s1823 + $0x14] sm:$0xf]
    %v1830 = vld [vmem:[%s1823 + $0x18] sm:$0xf]
    %v1831 = vld [vmem:[%s1823 + $0x1c] sm:$0xf]
    %v1832 = vld [vmem:[%s1823 + $0x20] sm:$0xf]
    %v1833 = vld [vmem:[%s1823 + $0x24] sm:$0xf]
    %v1834 = vld [vmem:[%s1823 + $0x28] sm:$0xf]
    %v1835 = vld [vmem:[%s1823 + $0x2c] sm:$0xf]
    %v1836 = vld [vmem:[%s1823 + $0x30] sm:$0xf]
    %v1837 = vld [vmem:[%s1823 + $0x34] sm:$0xf]
    %v1838 = vld [vmem:[%s1823 + $0x38] sm:$0xf]
    %v1839 = vld [vmem:[%s1823 + $0x3c] sm:$0xf]
    %v1840 = vld [vmem:[#allocation7 + $0xf] sm:$0x1]
    %v1841 = vpack.c.bf16 %v1822, %v1822
    %v1842 = vlaneseq
    %v1843 = vshrl.u32 %v1842, 7
    %v1844 = vsub.s32 0, %v1843
    %v1845 = vrot.slane %v1840, %v1844
    %v1862 = vunpack.c.l.b16 %v1824
    %v1863 = vunpack.c.l.b16 %v1825
    %v1864 = vunpack.c.l.b16 %v1826
    %v1865 = vunpack.c.l.b16 %v1827
    %v1866 = vunpack.c.l.b16 %v1828
    %v1867 = vunpack.c.l.b16 %v1829
    %v1868 = vunpack.c.l.b16 %v1830
    %v1869 = vunpack.c.l.b16 %v1831
    %v1870 = vunpack.c.l.b16 %v1832
    %v1871 = vunpack.c.l.b16 %v1833
    %v1872 = vunpack.c.l.b16 %v1834
    %v1873 = vunpack.c.l.b16 %v1835
    %v1874 = vunpack.c.l.b16 %v1836
    %v1875 = vunpack.c.l.b16 %v1837
    %v1876 = vunpack.c.l.b16 %v1838
    %v1877 = vunpack.c.l.b16 %v1839
    %v1878 = vpack.c.b16 %v1863, %v1862
    %v1879 = vpack.c.b16 %v1865, %v1864
    %v1880 = vpack.c.b16 %v1867, %v1866
    %v1881 = vpack.c.b16 %v1869, %v1868
    %v1882 = vpack.c.b16 %v1871, %v1870
    %v1883 = vpack.c.b16 %v1873, %v1872
    %v1884 = vpack.c.b16 %v1875, %v1874
    %v1885 = vpack.c.b16 %v1877, %v1876
    %1894 = vmatprep.subr.bf16.mxu0 0
    %1895 = vmatpush1.bf16.msra.mxu0 %v1878
    %1896 = vmatprep.subr.bf16.mxu0 0
    %1897 = vmatpush1.bf16.msra.mxu0 %v1879
    %1898 = vmatprep.subr.bf16.mxu0 0
    %1899 = vmatpush1.bf16.msra.mxu0 %v1880
    %1900 = vmatprep.subr.bf16.mxu0 0
    %1901 = vmatpush1.bf16.msra.mxu0 %v1881
    %1902 = vmatprep.subr.bf16.mxu0 0
    %1903 = vmatpush1.bf16.msra.mxu0 %v1882
    %1904 = vmatprep.subr.bf16.mxu0 0
    %1905 = vmatpush1.bf16.msra.mxu0 %v1883
    %1906 = vmatprep.subr.bf16.mxu0 0
    %1907 = vmatpush1.bf16.msra.mxu0 %v1884
    %1908 = vmatprep.subr.bf16.mxu0 0
    %1909 = vmatpush1.bf16.msra.mxu0 %v1885
    %1910 = vmatprep.subr.bf16.mxu0 0
    %1911 = vmatpush1.bf16.msra.mxu0 0
    %1912 = vmatprep.subr.bf16.mxu0 0
    %1913 = vmatpush1.bf16.msra.mxu0 0
    %1914 = vmatprep.subr.bf16.mxu0 0
    %1915 = vmatpush1.bf16.msra.mxu0 0
    %1916 = vmatprep.subr.bf16.mxu0 0
    %1917 = vmatpush1.bf16.msra.mxu0 0
    %1918 = vmatprep.subr.bf16.mxu0 0
    %1919 = vmatpush1.bf16.msra.mxu0 0
    %1920 = vmatprep.subr.bf16.mxu0 0
    %1921 = vmatpush1.bf16.msra.mxu0 0
    %1922 = vmatprep.subr.bf16.mxu0 0
    %1923 = vmatpush1.bf16.msra.mxu0 0
    %1924 = vmatprep.subr.bf16.mxu0 0
    %1925 = vmatpush1.bf16.msra.mxu0 0
    %1926 = vmatprep.mubr.bf16.mxu0 0
    %1927 = vmatmul.mubr.bf16.gmra.mrb[0].mxu0 %v1841
    %v1928 = vpop.f32.mrb[0].mxu0
    %v1929 = vadd.f32 %v1845, %v1928
    %v1930 = vpop.f32.mrb[0].mxu0
    %v1931 = vpop.f32.mrb[0].mxu0
    %v1932 = vpop.f32.mrb[0].mxu0
    %1933 = vdwg.mxu0
    %s1934 = scalar_lea.vmem [#allocation5], 1024
    %v1935 = vld [vmem:[%s1934] sm:$0xf]
    %v1936 = vld [vmem:[%s1934 + $0x4] sm:$0xf]
    %v1937 = vld [vmem:[%s1934 + $0x8] sm:$0xf]
    %v1938 = vld [vmem:[%s1934 + $0xc] sm:$0xf]
    %v1939 = vld [vmem:[%s1934 + $0x10] sm:$0xf]
    %v1940 = vld [vmem:[%s1934 + $0x14] sm:$0xf]
    %v1941 = vld [vmem:[%s1934 + $0x18] sm:$0xf]
    %v1942 = vld [vmem:[%s1934 + $0x1c] sm:$0xf]
    %v1943 = vld [vmem:[%s1934 + $0x20] sm:$0xf]
    %v1944 = vld [vmem:[%s1934 + $0x24] sm:$0xf]
    %v1945 = vld [vmem:[%s1934 + $0x28] sm:$0xf]
    %v1946 = vld [vmem:[%s1934 + $0x2c] sm:$0xf]
    %v1947 = vld [vmem:[%s1934 + $0x30] sm:$0xf]
    %v1948 = vld [vmem:[%s1934 + $0x34] sm:$0xf]
    %v1949 = vld [vmem:[%s1934 + $0x38] sm:$0xf]
    %v1950 = vld [vmem:[%s1934 + $0x3c] sm:$0xf]
    %v1951 = vld [vmem:[#allocation7 + $0x10] sm:$0x1]
    %v1952 = vpack.c.bf16 %v1929, %v1929
    %v1953 = vlaneseq
    %v1954 = vshrl.u32 %v1953, 7
    %v1955 = vsub.s32 0, %v1954
    %v1956 = vrot.slane %v1951, %v1955
    %v1973 = vunpack.c.l.b16 %v1935
    %v1974 = vunpack.c.l.b16 %v1936
    %v1975 = vunpack.c.l.b16 %v1937
    %v1976 = vunpack.c.l.b16 %v1938
    %v1977 = vunpack.c.l.b16 %v1939
    %v1978 = vunpack.c.l.b16 %v1940
    %v1979 = vunpack.c.l.b16 %v1941
    %v1980 = vunpack.c.l.b16 %v1942
    %v1981 = vunpack.c.l.b16 %v1943
    %v1982 = vunpack.c.l.b16 %v1944
    %v1983 = vunpack.c.l.b16 %v1945
    %v1984 = vunpack.c.l.b16 %v1946
    %v1985 = vunpack.c.l.b16 %v1947
    %v1986 = vunpack.c.l.b16 %v1948
    %v1987 = vunpack.c.l.b16 %v1949
    %v1988 = vunpack.c.l.b16 %v1950
    %v1989 = vpack.c.b16 %v1974, %v1973
    %v1990 = vpack.c.b16 %v1976, %v1975
    %v1991 = vpack.c.b16 %v1978, %v1977
    %v1992 = vpack.c.b16 %v1980, %v1979
    %v1993 = vpack.c.b16 %v1982, %v1981
    %v1994 = vpack.c.b16 %v1984, %v1983
    %v1995 = vpack.c.b16 %v1986, %v1985
    %v1996 = vpack.c.b16 %v1988, %v1987
    %2005 = vmatprep.subr.bf16.mxu0 0
    %2006 = vmatpush1.bf16.msra.mxu0 %v1989
    %2007 = vmatprep.subr.bf16.mxu0 0
    %2008 = vmatpush1.bf16.msra.mxu0 %v1990
    %2009 = vmatprep.subr.bf16.mxu0 0
    %2010 = vmatpush1.bf16.msra.mxu0 %v1991
    %2011 = vmatprep.subr.bf16.mxu0 0
    %2012 = vmatpush1.bf16.msra.mxu0 %v1992
    %2013 = vmatprep.subr.bf16.mxu0 0
    %2014 = vmatpush1.bf16.msra.mxu0 %v1993
    %2015 = vmatprep.subr.bf16.mxu0 0
    %2016 = vmatpush1.bf16.msra.mxu0 %v1994
    %2017 = vmatprep.subr.bf16.mxu0 0
    %2018 = vmatpush1.bf16.msra.mxu0 %v1995
    %2019 = vmatprep.subr.bf16.mxu0 0
    %2020 = vmatpush1.bf16.msra.mxu0 %v1996
    %2021 = vmatprep.subr.bf16.mxu0 0
    %2022 = vmatpush1.bf16.msra.mxu0 0
    %2023 = vmatprep.subr.bf16.mxu0 0
    %2024 = vmatpush1.bf16.msra.mxu0 0
    %2025 = vmatprep.subr.bf16.mxu0 0
    %2026 = vmatpush1.bf16.msra.mxu0 0
    %2027 = vmatprep.subr.bf16.mxu0 0
    %2028 = vmatpush1.bf16.msra.mxu0 0
    %2029 = vmatprep.subr.bf16.mxu0 0
    %2030 = vmatpush1.bf16.msra.mxu0 0
    %2031 = vmatprep.subr.bf16.mxu0 0
    %2032 = vmatpush1.bf16.msra.mxu0 0
    %2033 = vmatprep.subr.bf16.mxu0 0
    %2034 = vmatpush1.bf16.msra.mxu0 0
    %2035 = vmatprep.subr.bf16.mxu0 0
    %2036 = vmatpush1.bf16.msra.mxu0 0
    %2037 = vmatprep.mubr.bf16.mxu0 0
    %2038 = vmatmul.mubr.bf16.gmra.mrb[0].mxu0 %v1952
    %v2039 = vpop.f32.mrb[0].mxu0
    %v2040 = vadd.f32 %v1956, %v2039
    %v2041 = vpop.f32.mrb[0].mxu0
    %v2042 = vpop.f32.mrb[0].mxu0
    %v2043 = vpop.f32.mrb[0].mxu0
    %2044 = vdwg.mxu0
    %v2045 = vmax.f32 %v2040, 0.0
    %s2046 = scalar_lea.vmem [#allocation5], 1088
    %v2047 = vld [vmem:[%s2046] sm:$0xf]
    %v2048 = vld [vmem:[%s2046 + $0x4] sm:$0xf]
    %v2049 = vld [vmem:[%s2046 + $0x8] sm:$0xf]
    %v2050 = vld [vmem:[%s2046 + $0xc] sm:$0xf]
    %v2051 = vld [vmem:[%s2046 + $0x10] sm:$0xf]
    %v2052 = vld [vmem:[%s2046 + $0x14] sm:$0xf]
    %v2053 = vld [vmem:[%s2046 + $0x18] sm:$0xf]
    %v2054 = vld [vmem:[%s2046 + $0x1c] sm:$0xf]
    %v2055 = vld [vmem:[%s2046 + $0x20] sm:$0xf]
    %v2056 = vld [vmem:[%s2046 + $0x24] sm:$0xf]
    %v2057 = vld [vmem:[%s2046 + $0x28] sm:$0xf]
    %v2058 = vld [vmem:[%s2046 + $0x2c] sm:$0xf]
    %v2059 = vld [vmem:[%s2046 + $0x30] sm:$0xf]
    %v2060 = vld [vmem:[%s2046 + $0x34] sm:$0xf]
    %v2061 = vld [vmem:[%s2046 + $0x38] sm:$0xf]
    %v2062 = vld [vmem:[%s2046 + $0x3c] sm:$0xf]
    %v2063 = vld [vmem:[#allocation7 + $0x11] sm:$0x1]
    %v2064 = vpack.c.bf16 %v2045, %v2045
    %v2065 = vlaneseq
    %v2066 = vshrl.u32 %v2065, 7
    %v2067 = vsub.s32 0, %v2066
    %v2068 = vrot.slane %v2063, %v2067
    %v2085 = vunpack.c.l.b16 %v2047
    %v2086 = vunpack.c.l.b16 %v2048
    %v2087 = vunpack.c.l.b16 %v2049
    %v2088 = vunpack.c.l.b16 %v2050
    %v2089 = vunpack.c.l.b16 %v2051
    %v2090 = vunpack.c.l.b16 %v2052
    %v2091 = vunpack.c.l.b16 %v2053
    %v2092 = vunpack.c.l.b16 %v2054
    %v2093 = vunpack.c.l.b16 %v2055
    %v2094 = vunpack.c.l.b16 %v2056
    %v2095 = vunpack.c.l.b16 %v2057
    %v2096 = vunpack.c.l.b16 %v2058
    %v2097 = vunpack.c.l.b16 %v2059
    %v2098 = vunpack.c.l.b16 %v2060
    %v2099 = vunpack.c.l.b16 %v2061
    %v2100 = vunpack.c.l.b16 %v2062
    %v2101 = vpack.c.b16 %v2086, %v2085
    %v2102 = vpack.c.b16 %v2088, %v2087
    %v2103 = vpack.c.b16 %v2090, %v2089
    %v2104 = vpack.c.b16 %v2092, %v2091
    %v2105 = vpack.c.b16 %v2094, %v2093
    %v2106 = vpack.c.b16 %v2096, %v2095
    %v2107 = vpack.c.b16 %v2098, %v2097
    %v2108 = vpack.c.b16 %v2100, %v2099
    %2117 = vmatprep.subr.bf16.mxu0 0
    %2118 = vmatpush1.bf16.msra.mxu0 %v2101
    %2119 = vmatprep.subr.bf16.mxu0 0
    %2120 = vmatpush1.bf16.msra.mxu0 %v2102
    %2121 = vmatprep.subr.bf16.mxu0 0
    %2122 = vmatpush1.bf16.msra.mxu0 %v2103
    %2123 = vmatprep.subr.bf16.mxu0 0
    %2124 = vmatpush1.bf16.msra.mxu0 %v2104
    %2125 = vmatprep.subr.bf16.mxu0 0
    %2126 = vmatpush1.bf16.msra.mxu0 %v2105
    %2127 = vmatprep.subr.bf16.mxu0 0
    %2128 = vmatpush1.bf16.msra.mxu0 %v2106
    %2129 = vmatprep.subr.bf16.mxu0 0
    %2130 = vmatpush1.bf16.msra.mxu0 %v2107
    %2131 = vmatprep.subr.bf16.mxu0 0
    %2132 = vmatpush1.bf16.msra.mxu0 %v2108
    %2133 = vmatprep.subr.bf16.mxu0 0
    %2134 = vmatpush1.bf16.msra.mxu0 0
    %2135 = vmatprep.subr.bf16.mxu0 0
    %2136 = vmatpush1.bf16.msra.mxu0 0
    %2137 = vmatprep.subr.bf16.mxu0 0
    %2138 = vmatpush1.bf16.msra.mxu0 0
    %2139 = vmatprep.subr.bf16.mxu0 0
    %2140 = vmatpush1.bf16.msra.mxu0 0
    %2141 = vmatprep.subr.bf16.mxu0 0
    %2142 = vmatpush1.bf16.msra.mxu0 0
    %2143 = vmatprep.subr.bf16.mxu0 0
    %2144 = vmatpush1.bf16.msra.mxu0 0
    %2145 = vmatprep.subr.bf16.mxu0 0
    %2146 = vmatpush1.bf16.msra.mxu0 0
    %2147 = vmatprep.subr.bf16.mxu0 0
    %2148 = vmatpush1.bf16.msra.mxu0 0
    %2149 = vmatprep.mubr.bf16.mxu0 0
    %2150 = vmatmul.mubr.bf16.gmra.mrb[0].mxu0 %v2064
    %v2151 = vpop.f32.mrb[0].mxu0
    %v2152 = vadd.f32 %v2068, %v2151
    %v2153 = vpop.f32.mrb[0].mxu0
    %v2154 = vpop.f32.mrb[0].mxu0
    %v2155 = vpop.f32.mrb[0].mxu0
    %2156 = vdwg.mxu0
    %v2157 = vxor.u32 %v2152, 2147483648
    %v2158 = vmul.f32 %v2157, 1.442695
    %v2159 = vpow.pop %v2158
    %v2160 = vadd.f32 %v2159, 1.0
    %v2161 = vrcp.pop %v2160
    %v2162 = vmul.f32 1.0, %v2161
    %v2163 = vmul.f32 %v1929, %v2162
    %v2164 = vmul.f32 %v2163, 0.1
    %v2165 = vadd.f32 %v1704, %v2164
    %v2166 = vxor.u32 %v2165, 2147483648
    %v2167 = vmul.f32 %v2166, 1.442695
    %v2168 = vpow.pop %v2167
    %v2169 = vadd.f32 %v2168, 1.0
    %v2170 = vrcp.pop %v2169
    %v2171 = vmul.f32 1.0, %v2170
    %v2172 = vmul.f32 %v2165, %v2171
    %v2173 = vpack.c.bf16 %v2172, %v2172
    %v2174 = vld [vmem:[#allocation8] sm:$0xf]
    %v2175 = vld [vmem:[#allocation8 + $0x4] sm:$0xf]
    %v2176 = vld [vmem:[#allocation8 + $0x8] sm:$0xf]
    %v2177 = vld [vmem:[#allocation8 + $0xc] sm:$0xf]
    %v2178 = vld [vmem:[#allocation8 + $0x10] sm:$0xf]
    %v2179 = vld [vmem:[#allocation8 + $0x14] sm:$0xf]
    %v2180 = vld [vmem:[#allocation8 + $0x18] sm:$0xf]
    %v2181 = vld [vmem:[#allocation8 + $0x1c] sm:$0xf]
    %v2182 = vld [vmem:[#allocation8 + $0x20] sm:$0xf]
    %v2183 = vld [vmem:[#allocation8 + $0x24] sm:$0xf]
    %v2184 = vld [vmem:[#allocation8 + $0x28] sm:$0xf]
    %v2185 = vld [vmem:[#allocation8 + $0x2c] sm:$0xf]
    %v2186 = vld [vmem:[#allocation8 + $0x30] sm:$0xf]
    %v2187 = vld [vmem:[#allocation8 + $0x34] sm:$0xf]
    %v2188 = vld [vmem:[#allocation8 + $0x38] sm:$0xf]
    %v2189 = vld [vmem:[#allocation8 + $0x3c] sm:$0xf]
    %v2190 = vld [vmem:[%s4] sm:$0x1]
    %v2191 = vlaneseq
    %v2192 = vshrl.u32 %v2191, 7
    %v2193 = vsub.s32 0, %v2192
    %v2194 = vrot.slane %v2190, %v2193
    %v2211 = vunpack.c.l.b16 %v2174
    %v2212 = vunpack.c.l.b16 %v2175
    %v2213 = vunpack.c.l.b16 %v2176
    %v2214 = vunpack.c.l.b16 %v2177
    %v2215 = vunpack.c.l.b16 %v2178
    %v2216 = vunpack.c.l.b16 %v2179
    %v2217 = vunpack.c.l.b16 %v2180
    %v2218 = vunpack.c.l.b16 %v2181
    %v2219 = vunpack.c.l.b16 %v2182
    %v2220 = vunpack.c.l.b16 %v2183
    %v2221 = vunpack.c.l.b16 %v2184
    %v2222 = vunpack.c.l.b16 %v2185
    %v2223 = vunpack.c.l.b16 %v2186
    %v2224 = vunpack.c.l.b16 %v2187
    %v2225 = vunpack.c.l.b16 %v2188
    %v2226 = vunpack.c.l.b16 %v2189
    %v2227 = vpack.c.b16 %v2212, %v2211
    %v2228 = vpack.c.b16 %v2214, %v2213
    %v2229 = vpack.c.b16 %v2216, %v2215
    %v2230 = vpack.c.b16 %v2218, %v2217
    %v2231 = vpack.c.b16 %v2220, %v2219
    %v2232 = vpack.c.b16 %v2222, %v2221
    %v2233 = vpack.c.b16 %v2224, %v2223
    %v2234 = vpack.c.b16 %v2226, %v2225
    %2243 = vmatprep.subr.bf16.mxu0 0
    %2244 = vmatpush1.bf16.msra.mxu0 %v2227
    %2245 = vmatprep.subr.bf16.mxu0 0
    %2246 = vmatpush1.bf16.msra.mxu0 %v2228
    %2247 = vmatprep.subr.bf16.mxu0 0
    %2248 = vmatpush1.bf16.msra.mxu0 %v2229
    %2249 = vmatprep.subr.bf16.mxu0 0
    %2250 = vmatpush1.bf16.msra.mxu0 %v2230
    %2251 = vmatprep.subr.bf16.mxu0 0
    %2252 = vmatpush1.bf16.msra.mxu0 %v2231
    %2253 = vmatprep.subr.bf16.mxu0 0
    %2254 = vmatpush1.bf16.msra.mxu0 %v2232
    %2255 = vmatprep.subr.bf16.mxu0 0
    %2256 = vmatpush1.bf16.msra.mxu0 %v2233
    %2257 = vmatprep.subr.bf16.mxu0 0
    %2258 = vmatpush1.bf16.msra.mxu0 %v2234
    %2259 = vmatprep.subr.bf16.mxu0 0
    %2260 = vmatpush1.bf16.msra.mxu0 0
    %2261 = vmatprep.subr.bf16.mxu0 0
    %2262 = vmatpush1.bf16.msra.mxu0 0
    %2263 = vmatprep.subr.bf16.mxu0 0
    %2264 = vmatpush1.bf16.msra.mxu0 0
    %2265 = vmatprep.subr.bf16.mxu0 0
    %2266 = vmatpush1.bf16.msra.mxu0 0
    %2267 = vmatprep.subr.bf16.mxu0 0
    %2268 = vmatpush1.bf16.msra.mxu0 0
    %2269 = vmatprep.subr.bf16.mxu0 0
    %2270 = vmatpush1.bf16.msra.mxu0 0
    %2271 = vmatprep.subr.bf16.mxu0 0
    %2272 = vmatpush1.bf16.msra.mxu0 0
    %2273 = vmatprep.subr.bf16.mxu0 0
    %2274 = vmatpush1.bf16.msra.mxu0 0
    %2275 = vmatprep.mubr.bf16.mxu0 0
    %2276 = vmatmul.mubr.bf16.gmra.mrb[0].mxu0 %v2173
    %v2277 = vpop.f32.mrb[0].mxu0
    %v2278 = vadd.f32 %v2194, %v2277
    %v2279 = vpop.f32.mrb[0].mxu0
    %v2280 = vpop.f32.mrb[0].mxu0
    %v2281 = vpop.f32.mrb[0].mxu0
    %2282 = vdwg.mxu0
    %2283 = vst [vmem:[#allocation10] sm:$0xff] %v2278
    // Predicated region
    $region38: #{tpu_custom_call.1} parent=1 // pred_check
      _
    $region39: #{tpu_custom_call.1} parent=1 // pred_check_branch
      %2285 = sbr.rel (0) target = $region41
    $region40: #{tpu_custom_call.1} parent=1 // pred_region
      %s2287 = ssub.s32 128, 128
      %2288 = vsyncadd [#allocation4], %s2287
      %s2290 = sshll.u32 [#allocation10], 4
      %s2291 = int_to_ptr.vmem [resolvable:$true] %s2290
      %2293 = dma.vmem_to_hbm [thread:$0]  %s2291, 128, %s5, [#allocation4]
    $region41: #{tpu_custom_call.1} parent=1 // pred_fallthru
      _
    // Predicated region
    $region42: #{tpu_custom_call.1} parent=1 // pred_check
      _
    $region43: #{tpu_custom_call.1} parent=1 // pred_check_branch
      %2295 = sbr.rel (0) target = $region45
    $region44: #{tpu_custom_call.1} parent=1 // pred_region
      %2296 = dma.done [#allocation4], 128
    $region45: #{tpu_custom_call.1} parent=1 // pred_fallthru
      _
    %2297 = vsyncpa [#allocation3], 1
    %2298 = vsyncpa [#allocation6], 1
    %2299 = vsyncpa [#allocation9], 1
    %2300 = vsyncpa [#allocation4], 1

</llo_original>
